<compile_context>
chip_gen: v6e
topology: v6e:2x2x1
jax: 0.10.0
libtpu: 0.0.40
codegen_flags: <defaults>
</compile_context>

<pallas_src>
import functools

import jax
import jax.numpy as jnp
from jax import lax
from jax.experimental import pallas as pl
from jax.experimental.pallas import tpu as pltpu


# ----------------------------- fused Pallas kernel -----------------------------

def _fused_kernel(xf_ref,
                  wconv_ref, bconv_ref, wfc_ref, bfc_ref,
                  wihx_ref, wihf_ref, bih_ref, whh_ref, bhh_ref,
                  dw1_ref, db1_ref, dw2_ref, db2_ref, dws_ref, dbs_ref,
                  tw1_ref, tb1_ref, tw2_ref, tb2_ref, tws_ref, tbs_ref,
                  wsk_ref, bsk_ref,
                  out_ref):
    f32 = jnp.float32
    xf = xf_ref[...]                          # (B, S*C) flattened input
    B = xf.shape[0]
    H = whh_ref.shape[0]

    # ---- CNN: Conv1d folded into one matmul, then ReLU, then FC -> (B, 4) ----
    conv = jnp.maximum(
        jnp.dot(xf, wconv_ref[...], preferred_element_type=f32) + bconv_ref[...], 0.0)
    # TODO(synk): nn.Dropout(0.1) layers are identity in eval mode; no stochastic masks.
    feat = jnp.dot(conv, wfc_ref[...], preferred_element_type=f32) + bfc_ref[...]

    # ---- GRU: input projection hoisted out of the recurrence (one batched matmul) ----
    gi_all = (jnp.dot(xf, wihx_ref[...], preferred_element_type=f32)
              + jnp.dot(feat, wihf_ref[...], preferred_element_type=f32)
              + bih_ref[...])                                                    # (B, 3H)

    whh = whh_ref[...]
    bhh = bhh_ref[...]
    h = jnp.zeros((1, H), f32)
    rows = []
    for t in range(B):                       # static unroll: B is a compile-time constant
        gi = gi_all[t:t + 1, :]
        gh = jnp.dot(h, whh, preferred_element_type=f32) + bhh
        r = jax.nn.sigmoid(gi[:, :H] + gh[:, :H])
        z = jax.nn.sigmoid(gi[:, H:2 * H] + gh[:, H:2 * H])
        n = jnp.tanh(gi[:, 2 * H:] + r * gh[:, 2 * H:])
        h = (1.0 - z) * n + z * h
        rows.append(h)
    encoded = jnp.concatenate(rows, axis=0)                                      # (B, H)

    # ---- decoders: ResidualBlock(H -> 16*P) ----
    h1 = jnp.maximum(
        jnp.dot(encoded, dw1_ref[...], preferred_element_type=f32) + db1_ref[...], 0.0)
    dec = (jnp.dot(h1, dw2_ref[...], preferred_element_type=f32) + db2_ref[...]
           + jnp.dot(encoded, dws_ref[...], preferred_element_type=f32) + dbs_ref[...])

    # ---- temporal decoder as block-diagonal matmuls (stays 2-D, lane-dense) ----
    t1 = jnp.maximum(
        jnp.dot(dec, tw1_ref[...], preferred_element_type=f32) + tb1_ref[...], 0.0)
    td = (jnp.dot(t1, tw2_ref[...], preferred_element_type=f32) + tb2_ref[...]
          + jnp.dot(dec, tws_ref[...], preferred_element_type=f32) + tbs_ref[...])  # (B, P*C)

    # ---- lookback skip + seq_last folded into one matmul on x_flat ----
    skip = jnp.dot(xf, wsk_ref[...], preferred_element_type=f32) + bsk_ref[...]     # (B, P*C)

    out_ref[...] = td + skip


# ----------------------------- wrapper -----------------------------

_VMEM = functools.partial(pl.BlockSpec, memory_space=pltpu.MemorySpace.VMEM)


def model_forward(x, prepped, pred_len):
    B, S, C = x.shape
    xf = x.reshape(B, S * C)                  # contiguous flatten (free bitcast in XLA)
    args = (xf,
            prepped["wconv"], prepped["bconv"], prepped["wfc"], prepped["bfc"],
            prepped["wihx"], prepped["wihf"], prepped["bih"], prepped["whh"], prepped["bhh"],
            prepped["dw1"], prepped["db1"], prepped["dw2"], prepped["db2"],
            prepped["dws"], prepped["dbs"],
            prepped["tw1"], prepped["tb1"], prepped["tw2"], prepped["tb2"],
            prepped["tws"], prepped["tbs"],
            prepped["wsk"], prepped["bsk"])
    out_flat = pl.pallas_call(
        _fused_kernel,
        out_shape=jax.ShapeDtypeStruct((B, pred_len * C), jnp.float32),
        in_specs=[_VMEM() for _ in args],
        out_specs=_VMEM(),
    )(*args)
    return out_flat.reshape(B, pred_len, C)


# ----------------------------- one-time weight preparation -----------------------------

def prepare_params(params, seq_len, pred_len, enc_in):
    """All weight transposes / folds done once — none of this runs per forward call."""
    S, P, C = seq_len, pred_len, enc_in
    conv_w = params["conv_w"]                 # (O, C, K)  (torch Conv1d weight)
    O, _, K = conv_w.shape
    L1 = S - 1
    pad = (K - 1) // 2

    # Fold Conv1d(padding=pad) into a single (S*C, O*L1) matrix on the flattened input:
    #   wconv[s*C + c, o*L1 + l] = conv_w[o, c, s - l + pad]   (0 where tap out of range)
    s_idx = jnp.arange(S)[:, None]
    l_idx = jnp.arange(L1)[None, :]
    k_idx = s_idx - l_idx + pad
    valid = (k_idx >= 0) & (k_idx < K)
    wg = conv_w[:, :, jnp.clip(k_idx, 0, K - 1)]               # (O, C, S, L1)
    wg = jnp.where(valid[None, None], wg, 0.0)
    wconv = jnp.transpose(wg, (2, 1, 0, 3)).reshape(S * C, O * L1)

    eyeP = jnp.eye(P, dtype=jnp.float32)
    eyeC = jnp.eye(C, dtype=jnp.float32)

    # Lookback skip (Linear S->P over time) + seq_last broadcast, folded together:
    #   wsk[s*C + c, p*C + c'] = (lb_w[p, s] + [s == S-1]) * [c == c']
    a = params["lb_w"].T + jnp.zeros((S, P), jnp.float32).at[S - 1, :].set(1.0)
    wsk = jnp.kron(a, eyeC)

    row = lambda v: v.reshape(1, -1)
    return {
        "wconv": wconv,
        "bconv": row(jnp.repeat(params["conv_b"], L1)),
        "wfc": params["cnn_fc_w"].T,
        "bfc": row(params["cnn_fc_b"]),
        # GRU input weight split so the [x_flat, cnn_feat] concat never materializes.
        "wihx": params["gru_wih"][:, :S * C].T,
        "wihf": params["gru_wih"][:, S * C:].T,
        "bih": row(params["gru_bih"]),
        "whh": params["gru_whh"].T,
        "bhh": row(params["gru_bhh"]),
        "dw1": params["d_w1"].T, "db1": row(params["d_b1"]),
        "dw2": params["d_w2"].T, "db2": row(params["d_b2"]),
        "dws": params["d_ws"].T, "dbs": row(params["d_bs"]),
        # Temporal-decoder ResidualBlock as block-diagonal (per prediction step) weights.
        "tw1": jnp.kron(eyeP, params["t_w1"].T), "tb1": row(jnp.tile(params["t_b1"], P)),
        "tw2": jnp.kron(eyeP, params["t_w2"].T), "tb2": row(jnp.tile(params["t_b2"], P)),
        "tws": jnp.kron(eyeP, params["t_ws"].T), "tbs": row(jnp.tile(params["t_bs"], P)),
        "wsk": wsk,
        "bsk": row(jnp.repeat(params["lb_b"], C)),
    }


# ----------------------------- params / reference -----------------------------

def init_params(key, seq_len, pred_len, enc_in, hidden_size=128, cnn_output_dim=4,
                decoder_input_dim=16, temporal_decoder_hidden=32, kernel_size=4):
    keys = jax.random.split(key, 22)

    def nrm(k, shape, scale=0.1):
        return scale * jax.random.normal(k, shape, dtype=jnp.float32)

    d_gru = seq_len * enc_in + cnn_output_dim
    return {
        "conv_w": nrm(keys[0], (seq_len, enc_in, kernel_size)),
        "conv_b": nrm(keys[1], (seq_len,)),
        "cnn_fc_w": nrm(keys[2], (cnn_output_dim, seq_len * (seq_len - 1))),
        "cnn_fc_b": nrm(keys[3], (cnn_output_dim,)),
        "gru_wih": nrm(keys[4], (3 * hidden_size, d_gru)),
        "gru_whh": nrm(keys[5], (3 * hidden_size, hidden_size)),
        "gru_bih": nrm(keys[6], (3 * hidden_size,)),
        "gru_bhh": nrm(keys[7], (3 * hidden_size,)),
        "d_w1": nrm(keys[8], (hidden_size, hidden_size)),
        "d_b1": nrm(keys[9], (hidden_size,)),
        "d_w2": nrm(keys[10], (decoder_input_dim * pred_len, hidden_size)),
        "d_b2": nrm(keys[11], (decoder_input_dim * pred_len,)),
        "d_ws": nrm(keys[12], (decoder_input_dim * pred_len, hidden_size)),
        "d_bs": nrm(keys[13], (decoder_input_dim * pred_len,)),
        "t_w1": nrm(keys[14], (temporal_decoder_hidden, decoder_input_dim)),
        "t_b1": nrm(keys[15], (temporal_decoder_hidden,)),
        "t_w2": nrm(keys[16], (enc_in, temporal_decoder_hidden)),
        "t_b2": nrm(keys[17], (enc_in,)),
        "t_ws": nrm(keys[18], (enc_in, decoder_input_dim)),
        "t_bs": nrm(keys[19], (enc_in,)),
        "lb_w": nrm(keys[20], (pred_len, seq_len)),
        "lb_b": nrm(keys[21], (pred_len,)),
    }


def reference_forward(x, params, pred_len):
    """Pure-JAX transcription of the PyTorch forward (eval mode)."""
    B, S, C = x.shape
    H = params["gru_whh"].shape[1]
    # CNN (PyTorch NCW Conv1d, padding=1, kernel=4 -> output length S-1)
    xin = jnp.transpose(x, (0, 2, 1))                    # (B, C, S)
    xp = jnp.pad(xin, ((0, 0), (0, 0), (1, 1)))
    K = params["conv_w"].shape[2]
    L1 = S - 1
    conv = jnp.zeros((B, S, L1), jnp.float32)
    for k in range(K):
        conv = conv + jnp.einsum("oc,bcl->bol", params["conv_w"][:, :, k], xp[:, :, k:k + L1])
    conv = jnp.maximum(conv + params["conv_b"][None, :, None], 0.0)
    cnn_out = conv.reshape(B, -1) @ params["cnn_fc_w"].T + params["cnn_fc_b"]
    feat = jnp.concatenate([x.reshape(B, -1), cnn_out], axis=1)

    def gru_step(h, xt):
        gi = xt @ params["gru_wih"].T + params["gru_bih"]
        gh = h @ params["gru_whh"].T + params["gru_bhh"]
        r = jax.nn.sigmoid(gi[:H] + gh[:H])
        z = jax.nn.sigmoid(gi[H:2 * H] + gh[H:2 * H])
        n = jnp.tanh(gi[2 * H:] + r * gh[2 * H:])
        h_new = (1.0 - z) * n + z * h
        return h_new, h_new

    _, encoded = lax.scan(gru_step, jnp.zeros((H,), jnp.float32), feat)

    def rb(inp, w1, b1, w2, b2, ws, bs):
        hh = jnp.maximum(inp @ w1.T + b1, 0.0)
        return hh @ w2.T + b2 + inp @ ws.T + bs

    dec = rb(encoded, params["d_w1"], params["d_b1"], params["d_w2"], params["d_b2"],
             params["d_ws"], params["d_bs"])
    ti = dec.reshape(B, pred_len, -1)
    td = rb(ti, params["t_w1"], params["t_b1"], params["t_w2"], params["t_b2"],
            params["t_ws"], params["t_bs"])
    skip = jnp.transpose(x, (0, 2, 1)) @ params["lb_w"].T + params["lb_b"]   # (B, C, P)
    skip = jnp.transpose(skip, (0, 2, 1))                                    # (B, P, C)
    return td + skip + x[:, -1:, :]


# ----------------------------- main -----------------------------

if __name__ == "__main__":
    seq_len, pred_len, enc_in, batch = 16, 8, 4, 2
    key = jax.random.PRNGKey(0)
    kx, kp = jax.random.split(key)
    x = jax.random.normal(kx, (batch, seq_len, enc_in), dtype=jnp.float32)
    # x_mark / y_true / y_mark are accepted but unused by Model.forward.
    params = init_params(kp, seq_len, pred_len, enc_in)
    prepped = prepare_params(params, seq_len, pred_len, enc_in)   # one-time weight prep

    fwd = jax.jit(functools.partial(model_forward, pred_len=pred_len))
    y = jax.block_until_ready(fwd(x, prepped))

    y_ref = reference_forward(x, params, pred_len)
    assert y.shape == (batch, pred_len, enc_in), y.shape
    assert jnp.allclose(y, y_ref, rtol=2e-2, atol=2e-2), float(jnp.max(jnp.abs(y - y_ref)))
    print("KERNEL_OK")
</pallas_src>

<mosaic_0001>
module attributes {stable_mosaic.version = 11 : i64} {
  func.func @_fused_kernel(%arg0: memref<2x64xf32, #tpu.memory_space<vmem>>, %arg1: memref<64x240xf32, #tpu.memory_space<vmem>>, %arg2: memref<1x240xf32, #tpu.memory_space<vmem>>, %arg3: memref<240x4xf32, #tpu.memory_space<vmem>>, %arg4: memref<1x4xf32, #tpu.memory_space<vmem>>, %arg5: memref<64x384xf32, #tpu.memory_space<vmem>>, %arg6: memref<4x384xf32, #tpu.memory_space<vmem>>, %arg7: memref<1x384xf32, #tpu.memory_space<vmem>>, %arg8: memref<128x384xf32, #tpu.memory_space<vmem>>, %arg9: memref<1x384xf32, #tpu.memory_space<vmem>>, %arg10: memref<128x128xf32, #tpu.memory_space<vmem>>, %arg11: memref<1x128xf32, #tpu.memory_space<vmem>>, %arg12: memref<128x128xf32, #tpu.memory_space<vmem>>, %arg13: memref<1x128xf32, #tpu.memory_space<vmem>>, %arg14: memref<128x128xf32, #tpu.memory_space<vmem>>, %arg15: memref<1x128xf32, #tpu.memory_space<vmem>>, %arg16: memref<128x256xf32, #tpu.memory_space<vmem>>, %arg17: memref<1x256xf32, #tpu.memory_space<vmem>>, %arg18: memref<256x32xf32, #tpu.memory_space<vmem>>, %arg19: memref<1x32xf32, #tpu.memory_space<vmem>>, %arg20: memref<128x32xf32, #tpu.memory_space<vmem>>, %arg21: memref<1x32xf32, #tpu.memory_space<vmem>>, %arg22: memref<64x32xf32, #tpu.memory_space<vmem>>, %arg23: memref<1x32xf32, #tpu.memory_space<vmem>>, %arg24: memref<2x32xf32, #tpu.memory_space<vmem>>) attributes {dimension_semantics = [], scalar_prefetch = 0 : i64, scratch_operands = 0 : i64, tpu.core_type = #tpu.core_type<tc>} {
    %c0 = arith.constant 0 : index
    %c0_0 = arith.constant 0 : index
    %0 = vector.load %arg0[%c0, %c0_0] : memref<2x64xf32, #tpu.memory_space<vmem>>, vector<2x64xf32>
    %c0_1 = arith.constant 0 : index
    %c0_2 = arith.constant 0 : index
    %1 = vector.load %arg1[%c0_1, %c0_2] : memref<64x240xf32, #tpu.memory_space<vmem>>, vector<64x240xf32>
    %cst = arith.constant dense<0.000000e+00> : vector<2x240xf32>
    %2 = tpu.matmul %0, %1, %cst {dimension_numbers = #tpu.dot_dimension_numbers<[1], [0], [0], [1], [0, 0, 1, 1], [], []>} : vector<2x64xf32>, vector<64x240xf32>, vector<2x240xf32> -> vector<2x240xf32>
    %c0_3 = arith.constant 0 : index
    %c0_4 = arith.constant 0 : index
    %3 = vector.load %arg2[%c0_3, %c0_4] : memref<1x240xf32, #tpu.memory_space<vmem>>, vector<1x240xf32>
    %4 = vector.broadcast %3 : vector<1x240xf32> to vector<2x240xf32>
    %5 = arith.addf %2, %4 : vector<2x240xf32>
    %cst_5 = arith.constant 0.000000e+00 : f32
    %6 = vector.broadcast %cst_5 : f32 to vector<2x240xf32>
    %7 = arith.maximumf %5, %6 : vector<2x240xf32>
    %c0_6 = arith.constant 0 : index
    %c0_7 = arith.constant 0 : index
    %8 = vector.load %arg3[%c0_6, %c0_7] : memref<240x4xf32, #tpu.memory_space<vmem>>, vector<240x4xf32>
    %cst_8 = arith.constant dense<0.000000e+00> : vector<2x4xf32>
    %9 = tpu.matmul %7, %8, %cst_8 {dimension_numbers = #tpu.dot_dimension_numbers<[1], [0], [0], [1], [0, 0, 1, 1], [], []>} : vector<2x240xf32>, vector<240x4xf32>, vector<2x4xf32> -> vector<2x4xf32>
    %c0_9 = arith.constant 0 : index
    %c0_10 = arith.constant 0 : index
    %10 = vector.load %arg4[%c0_9, %c0_10] : memref<1x4xf32, #tpu.memory_space<vmem>>, vector<1x4xf32>
    %11 = vector.broadcast %10 : vector<1x4xf32> to vector<2x4xf32>
    %12 = arith.addf %9, %11 : vector<2x4xf32>
    %c0_11 = arith.constant 0 : index
    %c0_12 = arith.constant 0 : index
    %13 = vector.load %arg5[%c0_11, %c0_12] : memref<64x384xf32, #tpu.memory_space<vmem>>, vector<64x384xf32>
    %cst_13 = arith.constant dense<0.000000e+00> : vector<2x384xf32>
    %14 = tpu.matmul %0, %13, %cst_13 {dimension_numbers = #tpu.dot_dimension_numbers<[1], [0], [0], [1], [0, 0, 1, 1], [], []>} : vector<2x64xf32>, vector<64x384xf32>, vector<2x384xf32> -> vector<2x384xf32>
    %c0_14 = arith.constant 0 : index
    %c0_15 = arith.constant 0 : index
    %15 = vector.load %arg6[%c0_14, %c0_15] : memref<4x384xf32, #tpu.memory_space<vmem>>, vector<4x384xf32>
    %cst_16 = arith.constant dense<0.000000e+00> : vector<2x384xf32>
    %16 = tpu.matmul %12, %15, %cst_16 {dimension_numbers = #tpu.dot_dimension_numbers<[1], [0], [0], [1], [0, 0, 1, 1], [], []>} : vector<2x4xf32>, vector<4x384xf32>, vector<2x384xf32> -> vector<2x384xf32>
    %17 = arith.addf %14, %16 : vector<2x384xf32>
    %c0_17 = arith.constant 0 : index
    %c0_18 = arith.constant 0 : index
    %18 = vector.load %arg7[%c0_17, %c0_18] : memref<1x384xf32, #tpu.memory_space<vmem>>, vector<1x384xf32>
    %19 = vector.broadcast %18 : vector<1x384xf32> to vector<2x384xf32>
    %20 = arith.addf %17, %19 : vector<2x384xf32>
    %c0_19 = arith.constant 0 : index
    %c0_20 = arith.constant 0 : index
    %21 = vector.load %arg8[%c0_19, %c0_20] : memref<128x384xf32, #tpu.memory_space<vmem>>, vector<128x384xf32>
    %c0_21 = arith.constant 0 : index
    %c0_22 = arith.constant 0 : index
    %22 = vector.load %arg9[%c0_21, %c0_22] : memref<1x384xf32, #tpu.memory_space<vmem>>, vector<1x384xf32>
    %cst_23 = arith.constant 0.000000e+00 : f32
    %23 = vector.broadcast %cst_23 : f32 to vector<1x128xf32>
    %24 = vector.extract_strided_slice %20 {offsets = [0, 0], sizes = [1, 384], strides = [1, 1]} : vector<2x384xf32> to vector<1x384xf32>
    %cst_24 = arith.constant dense<0.000000e+00> : vector<1x384xf32>
    %25 = tpu.matmul %23, %21, %cst_24 {dimension_numbers = #tpu.dot_dimension_numbers<[1], [0], [0], [1], [0, 0, 1, 1], [], []>} : vector<1x128xf32>, vector<128x384xf32>, vector<1x384xf32> -> vector<1x384xf32>
    %26 = arith.addf %25, %22 : vector<1x384xf32>
    %27 = vector.extract_strided_slice %24 {offsets = [0, 0], sizes = [1, 128], strides = [1, 1]} : vector<1x384xf32> to vector<1x128xf32>
    %28 = vector.extract_strided_slice %26 {offsets = [0, 0], sizes = [1, 128], strides = [1, 1]} : vector<1x384xf32> to vector<1x128xf32>
    %29 = arith.addf %27, %28 : vector<1x128xf32>
    %30 = arith.negf %29 : vector<1x128xf32>
    %31 = math.exp %30 : vector<1x128xf32>
    %cst_25 = arith.constant 1.000000e+00 : f32
    %32 = vector.broadcast %cst_25 : f32 to vector<1x128xf32>
    %33 = arith.addf %32, %31 : vector<1x128xf32>
    %34 = arith.divf %32, %33 : vector<1x128xf32>
    %35 = vector.extract_strided_slice %24 {offsets = [0, 128], sizes = [1, 128], strides = [1, 1]} : vector<1x384xf32> to vector<1x128xf32>
    %36 = vector.extract_strided_slice %26 {offsets = [0, 128], sizes = [1, 128], strides = [1, 1]} : vector<1x384xf32> to vector<1x128xf32>
    %37 = arith.addf %35, %36 : vector<1x128xf32>
    %38 = arith.negf %37 : vector<1x128xf32>
    %39 = math.exp %38 : vector<1x128xf32>
    %cst_26 = arith.constant 1.000000e+00 : f32
    %40 = vector.broadcast %cst_26 : f32 to vector<1x128xf32>
    %41 = arith.addf %40, %39 : vector<1x128xf32>
    %42 = arith.divf %40, %41 : vector<1x128xf32>
    %43 = vector.extract_strided_slice %24 {offsets = [0, 256], sizes = [1, 128], strides = [1, 1]} : vector<1x384xf32> to vector<1x128xf32>
    %44 = vector.extract_strided_slice %26 {offsets = [0, 256], sizes = [1, 128], strides = [1, 1]} : vector<1x384xf32> to vector<1x128xf32>
    %45 = arith.mulf %34, %44 : vector<1x128xf32>
    %46 = arith.addf %43, %45 : vector<1x128xf32>
    %47 = math.tanh %46 : vector<1x128xf32>
    %cst_27 = arith.constant 1.000000e+00 : f32
    %48 = vector.broadcast %cst_27 : f32 to vector<1x128xf32>
    %49 = arith.subf %48, %42 : vector<1x128xf32>
    %50 = arith.mulf %49, %47 : vector<1x128xf32>
    %51 = arith.mulf %42, %23 : vector<1x128xf32>
    %52 = arith.addf %50, %51 : vector<1x128xf32>
    %53 = vector.extract_strided_slice %20 {offsets = [1, 0], sizes = [1, 384], strides = [1, 1]} : vector<2x384xf32> to vector<1x384xf32>
    %cst_28 = arith.constant dense<0.000000e+00> : vector<1x384xf32>
    %54 = tpu.matmul %52, %21, %cst_28 {dimension_numbers = #tpu.dot_dimension_numbers<[1], [0], [0], [1], [0, 0, 1, 1], [], []>} : vector<1x128xf32>, vector<128x384xf32>, vector<1x384xf32> -> vector<1x384xf32>
    %55 = arith.addf %54, %22 : vector<1x384xf32>
    %56 = vector.extract_strided_slice %53 {offsets = [0, 0], sizes = [1, 128], strides = [1, 1]} : vector<1x384xf32> to vector<1x128xf32>
    %57 = vector.extract_strided_slice %55 {offsets = [0, 0], sizes = [1, 128], strides = [1, 1]} : vector<1x384xf32> to vector<1x128xf32>
    %58 = arith.addf %56, %57 : vector<1x128xf32>
    %59 = arith.negf %58 : vector<1x128xf32>
    %60 = math.exp %59 : vector<1x128xf32>
    %cst_29 = arith.constant 1.000000e+00 : f32
    %61 = vector.broadcast %cst_29 : f32 to vector<1x128xf32>
    %62 = arith.addf %61, %60 : vector<1x128xf32>
    %63 = arith.divf %61, %62 : vector<1x128xf32>
    %64 = vector.extract_strided_slice %53 {offsets = [0, 128], sizes = [1, 128], strides = [1, 1]} : vector<1x384xf32> to vector<1x128xf32>
    %65 = vector.extract_strided_slice %55 {offsets = [0, 128], sizes = [1, 128], strides = [1, 1]} : vector<1x384xf32> to vector<1x128xf32>
    %66 = arith.addf %64, %65 : vector<1x128xf32>
    %67 = arith.negf %66 : vector<1x128xf32>
    %68 = math.exp %67 : vector<1x128xf32>
    %cst_30 = arith.constant 1.000000e+00 : f32
    %69 = vector.broadcast %cst_30 : f32 to vector<1x128xf32>
    %70 = arith.addf %69, %68 : vector<1x128xf32>
    %71 = arith.divf %69, %70 : vector<1x128xf32>
    %72 = vector.extract_strided_slice %53 {offsets = [0, 256], sizes = [1, 128], strides = [1, 1]} : vector<1x384xf32> to vector<1x128xf32>
    %73 = vector.extract_strided_slice %55 {offsets = [0, 256], sizes = [1, 128], strides = [1, 1]} : vector<1x384xf32> to vector<1x128xf32>
    %74 = arith.mulf %63, %73 : vector<1x128xf32>
    %75 = arith.addf %72, %74 : vector<1x128xf32>
    %76 = math.tanh %75 : vector<1x128xf32>
    %cst_31 = arith.constant 1.000000e+00 : f32
    %77 = vector.broadcast %cst_31 : f32 to vector<1x128xf32>
    %78 = arith.subf %77, %71 : vector<1x128xf32>
    %79 = arith.mulf %78, %76 : vector<1x128xf32>
    %80 = arith.mulf %71, %52 : vector<1x128xf32>
    %81 = arith.addf %79, %80 : vector<1x128xf32>
    %82 = tpu.concatenate %52, %81 in 0 : vector<1x128xf32>, vector<1x128xf32> -> vector<2x128xf32>
    %c0_32 = arith.constant 0 : index
    %c0_33 = arith.constant 0 : index
    %83 = vector.load %arg10[%c0_32, %c0_33] : memref<128x128xf32, #tpu.memory_space<vmem>>, vector<128x128xf32>
    %cst_34 = arith.constant dense<0.000000e+00> : vector<2x128xf32>
    %84 = tpu.matmul %82, %83, %cst_34 {dimension_numbers = #tpu.dot_dimension_numbers<[1], [0], [0], [1], [0, 0, 1, 1], [], []>} : vector<2x128xf32>, vector<128x128xf32>, vector<2x128xf32> -> vector<2x128xf32>
    %c0_35 = arith.constant 0 : index
    %c0_36 = arith.constant 0 : index
    %85 = vector.load %arg11[%c0_35, %c0_36] : memref<1x128xf32, #tpu.memory_space<vmem>>, vector<1x128xf32>
    %86 = vector.broadcast %85 : vector<1x128xf32> to vector<2x128xf32>
    %87 = arith.addf %84, %86 : vector<2x128xf32>
    %cst_37 = arith.constant 0.000000e+00 : f32
    %88 = vector.broadcast %cst_37 : f32 to vector<2x128xf32>
    %89 = arith.maximumf %87, %88 : vector<2x128xf32>
    %c0_38 = arith.constant 0 : index
    %c0_39 = arith.constant 0 : index
    %90 = vector.load %arg12[%c0_38, %c0_39] : memref<128x128xf32, #tpu.memory_space<vmem>>, vector<128x128xf32>
    %cst_40 = arith.constant dense<0.000000e+00> : vector<2x128xf32>
    %91 = tpu.matmul %89, %90, %cst_40 {dimension_numbers = #tpu.dot_dimension_numbers<[1], [0], [0], [1], [0, 0, 1, 1], [], []>} : vector<2x128xf32>, vector<128x128xf32>, vector<2x128xf32> -> vector<2x128xf32>
    %c0_41 = arith.constant 0 : index
    %c0_42 = arith.constant 0 : index
    %92 = vector.load %arg13[%c0_41, %c0_42] : memref<1x128xf32, #tpu.memory_space<vmem>>, vector<1x128xf32>
    %93 = vector.broadcast %92 : vector<1x128xf32> to vector<2x128xf32>
    %94 = arith.addf %91, %93 : vector<2x128xf32>
    %c0_43 = arith.constant 0 : index
    %c0_44 = arith.constant 0 : index
    %95 = vector.load %arg14[%c0_43, %c0_44] : memref<128x128xf32, #tpu.memory_space<vmem>>, vector<128x128xf32>
    %cst_45 = arith.constant dense<0.000000e+00> : vector<2x128xf32>
    %96 = tpu.matmul %82, %95, %cst_45 {dimension_numbers = #tpu.dot_dimension_numbers<[1], [0], [0], [1], [0, 0, 1, 1], [], []>} : vector<2x128xf32>, vector<128x128xf32>, vector<2x128xf32> -> vector<2x128xf32>
    %97 = arith.addf %94, %96 : vector<2x128xf32>
    %c0_46 = arith.constant 0 : index
    %c0_47 = arith.constant 0 : index
    %98 = vector.load %arg15[%c0_46, %c0_47] : memref<1x128xf32, #tpu.memory_space<vmem>>, vector<1x128xf32>
    %99 = vector.broadcast %98 : vector<1x128xf32> to vector<2x128xf32>
    %100 = arith.addf %97, %99 : vector<2x128xf32>
    %c0_48 = arith.constant 0 : index
    %c0_49 = arith.constant 0 : index
    %101 = vector.load %arg16[%c0_48, %c0_49] : memref<128x256xf32, #tpu.memory_space<vmem>>, vector<128x256xf32>
    %cst_50 = arith.constant dense<0.000000e+00> : vector<2x256xf32>
    %102 = tpu.matmul %100, %101, %cst_50 {dimension_numbers = #tpu.dot_dimension_numbers<[1], [0], [0], [1], [0, 0, 1, 1], [], []>} : vector<2x128xf32>, vector<128x256xf32>, vector<2x256xf32> -> vector<2x256xf32>
    %c0_51 = arith.constant 0 : index
    %c0_52 = arith.constant 0 : index
    %103 = vector.load %arg17[%c0_51, %c0_52] : memref<1x256xf32, #tpu.memory_space<vmem>>, vector<1x256xf32>
    %104 = vector.broadcast %103 : vector<1x256xf32> to vector<2x256xf32>
    %105 = arith.addf %102, %104 : vector<2x256xf32>
    %cst_53 = arith.constant 0.000000e+00 : f32
    %106 = vector.broadcast %cst_53 : f32 to vector<2x256xf32>
    %107 = arith.maximumf %105, %106 : vector<2x256xf32>
    %c0_54 = arith.constant 0 : index
    %c0_55 = arith.constant 0 : index
    %108 = vector.load %arg18[%c0_54, %c0_55] : memref<256x32xf32, #tpu.memory_space<vmem>>, vector<256x32xf32>
    %cst_56 = arith.constant dense<0.000000e+00> : vector<2x32xf32>
    %109 = tpu.matmul %107, %108, %cst_56 {dimension_numbers = #tpu.dot_dimension_numbers<[1], [0], [0], [1], [0, 0, 1, 1], [], []>} : vector<2x256xf32>, vector<256x32xf32>, vector<2x32xf32> -> vector<2x32xf32>
    %c0_57 = arith.constant 0 : index
    %c0_58 = arith.constant 0 : index
    %110 = vector.load %arg19[%c0_57, %c0_58] : memref<1x32xf32, #tpu.memory_space<vmem>>, vector<1x32xf32>
    %111 = vector.broadcast %110 : vector<1x32xf32> to vector<2x32xf32>
    %112 = arith.addf %109, %111 : vector<2x32xf32>
    %c0_59 = arith.constant 0 : index
    %c0_60 = arith.constant 0 : index
    %113 = vector.load %arg20[%c0_59, %c0_60] : memref<128x32xf32, #tpu.memory_space<vmem>>, vector<128x32xf32>
    %cst_61 = arith.constant dense<0.000000e+00> : vector<2x32xf32>
    %114 = tpu.matmul %100, %113, %cst_61 {dimension_numbers = #tpu.dot_dimension_numbers<[1], [0], [0], [1], [0, 0, 1, 1], [], []>} : vector<2x128xf32>, vector<128x32xf32>, vector<2x32xf32> -> vector<2x32xf32>
    %115 = arith.addf %112, %114 : vector<2x32xf32>
    %c0_62 = arith.constant 0 : index
    %c0_63 = arith.constant 0 : index
    %116 = vector.load %arg21[%c0_62, %c0_63] : memref<1x32xf32, #tpu.memory_space<vmem>>, vector<1x32xf32>
    %117 = vector.broadcast %116 : vector<1x32xf32> to vector<2x32xf32>
    %118 = arith.addf %115, %117 : vector<2x32xf32>
    %c0_64 = arith.constant 0 : index
    %c0_65 = arith.constant 0 : index
    %119 = vector.load %arg22[%c0_64, %c0_65] : memref<64x32xf32, #tpu.memory_space<vmem>>, vector<64x32xf32>
    %cst_66 = arith.constant dense<0.000000e+00> : vector<2x32xf32>
    %120 = tpu.matmul %0, %119, %cst_66 {dimension_numbers = #tpu.dot_dimension_numbers<[1], [0], [0], [1], [0, 0, 1, 1], [], []>} : vector<2x64xf32>, vector<64x32xf32>, vector<2x32xf32> -> vector<2x32xf32>
    %c0_67 = arith.constant 0 : index
    %c0_68 = arith.constant 0 : index
    %121 = vector.load %arg23[%c0_67, %c0_68] : memref<1x32xf32, #tpu.memory_space<vmem>>, vector<1x32xf32>
    %122 = vector.broadcast %121 : vector<1x32xf32> to vector<2x32xf32>
    %123 = arith.addf %120, %122 : vector<2x32xf32>
    %124 = arith.addf %118, %123 : vector<2x32xf32>
    %c0_69 = arith.constant 0 : index
    %c0_70 = arith.constant 0 : index
    %125 = vector.load %arg24[%c0_69, %c0_70] : memref<2x32xf32, #tpu.memory_space<vmem>>, vector<2x32xf32>
    tpu.vector_store %arg24[%c0_69, %c0_70], %124 {strides = array<i32>} : memref<2x32xf32, #tpu.memory_space<vmem>>, vector<2x32xf32>,
    return
  }
}

</mosaic_0001>

<llo_original>
// kernel: model_forward.1
$region0: #{model_forward.1}
  #allocation0 [shape = 'u32[]', space=smem, size = 0x4, offset = 0x4, fixed_abs, tag = 'smem constant byte address 0x4 - core index']
  #allocation1 [shape = 'u32[144,128]{1,0:T(1,128)}', space=vmem, size = 0x12000, scoped, tag = 'internal scratch']
  %s0 = inlined_call_operand.vmem [shape: f32[2,64], index: 0, kind: input, shape index: {}]
  %s1 = inlined_call_operand.hbm [shape: f32[64,240], index: 1, kind: input, shape index: {}]
  %s2 = inlined_call_operand.hbm [shape: f32[1,240], index: 2, kind: input, shape index: {}]
  %s3 = inlined_call_operand.vmem [shape: f32[240,4], index: 3, kind: input, shape index: {}]
  %s4 = inlined_call_operand.vmem [shape: f32[1,4], index: 4, kind: input, shape index: {}]
  %s5 = inlined_call_operand.vmem [shape: f32[64,384], index: 5, kind: input, shape index: {}]
  %s6 = inlined_call_operand.hbm [shape: f32[4,384], index: 6, kind: input, shape index: {}]
  %s7 = inlined_call_operand.hbm [shape: f32[1,384], index: 7, kind: input, shape index: {}]
  %s8 = inlined_call_operand.vmem [shape: f32[128,384], index: 8, kind: input, shape index: {}]
  %s9 = inlined_call_operand.hbm [shape: f32[1,384], index: 9, kind: input, shape index: {}]
  %s10 = inlined_call_operand.hbm [shape: f32[128,128], index: 10, kind: input, shape index: {}]
  %s11 = inlined_call_operand.hbm [shape: f32[1,128], index: 11, kind: input, shape index: {}]
  %s12 = inlined_call_operand.hbm [shape: f32[128,128], index: 12, kind: input, shape index: {}]
  %s13 = inlined_call_operand.hbm [shape: f32[1,128], index: 13, kind: input, shape index: {}]
  %s14 = inlined_call_operand.hbm [shape: f32[128,128], index: 14, kind: input, shape index: {}]
  %s15 = inlined_call_operand.hbm [shape: f32[1,128], index: 15, kind: input, shape index: {}]
  %s16 = inlined_call_operand.vmem [shape: f32[128,256], index: 16, kind: input, shape index: {}]
  %s17 = inlined_call_operand.hbm [shape: f32[1,256], index: 17, kind: input, shape index: {}]
  %s18 = inlined_call_operand.vmem [shape: f32[256,32], index: 18, kind: input, shape index: {}]
  %s19 = inlined_call_operand.hbm [shape: f32[1,32], index: 19, kind: input, shape index: {}]
  %s20 = inlined_call_operand.vmem [shape: f32[128,32], index: 20, kind: input, shape index: {}]
  %s21 = inlined_call_operand.hbm [shape: f32[1,32], index: 21, kind: input, shape index: {}]
  %s22 = inlined_call_operand.vmem [shape: f32[64,32], index: 22, kind: input, shape index: {}]
  %s23 = inlined_call_operand.hbm [shape: f32[1,32], index: 23, kind: input, shape index: {}]
  %s24 = inlined_call_operand.vmem [shape: f32[2,32], index: 24, kind: output, shape index: {}]
  %s25 = sld [smem:[#allocation0]]
  $region166: #{model_forward.1} parent=0
    _
  %s27 = ssub.s32 1, %s25
  %s28 = scalar_select 0, %s27, %s25
  $region1: #{model_forward.1} parent=0
    #allocation2 [shape = 'u8[65536]{0}', space=vmem, size = 0x10000, scoped, tag = 'input window, operand 1, single buffered']
    #allocation3 [shape = 's32[1]{0}', space=sflag, size = 0x4, scoped, tag = 'scoped memory for model_forward.1']
    #allocation4 [shape = 'u8[1024]{0}', space=vmem, size = 0x400, scoped, tag = 'input window, operand 2, single buffered']
    #allocation5 [shape = 's32[1]{0}', space=sflag, size = 0x4, scoped, tag = 'scoped memory for model_forward.1']
    #allocation6 [shape = 'u8[6144]{0}', space=vmem, size = 0x1800, scoped, tag = 'input window, operand 6, single buffered']
    #allocation7 [shape = 'u8[1536]{0}', space=vmem, size = 0x800, scoped, tag = 'input window, operand 7, single buffered']
    #allocation8 [shape = 's32[1]{0}', space=sflag, size = 0x4, scoped, tag = 'scoped memory for model_forward.1']
    #allocation9 [shape = 'u8[1536]{0}', space=vmem, size = 0x800, scoped, tag = 'input window, operand 9, single buffered']
    #allocation10 [shape = 'u8[65536]{0}', space=vmem, size = 0x10000, scoped, tag = 'input window, operand 10, single buffered']
    #allocation11 [shape = 's32[1]{0}', space=sflag, size = 0x4, scoped, tag = 'scoped memory for model_forward.1']
    #allocation12 [shape = 'u8[512]{0}', space=vmem, size = 0x400, scoped, tag = 'input window, operand 11, single buffered']
    #allocation13 [shape = 'u8[65536]{0}', space=vmem, size = 0x10000, scoped, tag = 'input window, operand 12, single buffered']
    #allocation14 [shape = 's32[1]{0}', space=sflag, size = 0x4, scoped, tag = 'scoped memory for model_forward.1']
    #allocation15 [shape = 'u8[512]{0}', space=vmem, size = 0x400, scoped, tag = 'input window, operand 13, single buffered']
    #allocation16 [shape = 'u8[65536]{0}', space=vmem, size = 0x10000, scoped, tag = 'input window, operand 14, single buffered']
    #allocation17 [shape = 's32[1]{0}', space=sflag, size = 0x4, scoped, tag = 'scoped memory for model_forward.1']
    #allocation18 [shape = 'u8[512]{0}', space=vmem, size = 0x400, scoped, tag = 'input window, operand 15, single buffered']
    #allocation19 [shape = 'u8[1024]{0}', space=vmem, size = 0x400, scoped, tag = 'input window, operand 17, single buffered']
    #allocation20 [shape = 's32[1]{0}', space=sflag, size = 0x4, scoped, tag = 'scoped memory for model_forward.1']
    #allocation21 [shape = 'u8[512]{0}', space=vmem, size = 0x400, scoped, tag = 'input window, operand 19, single buffered']
    #allocation22 [shape = 'u8[512]{0}', space=vmem, size = 0x400, scoped, tag = 'input window, operand 21, single buffered']
    #allocation23 [shape = 's32[1]{0}', space=sflag, size = 0x4, scoped, tag = 'scoped memory for model_forward.1']
    #allocation24 [shape = 'u8[512]{0}', space=vmem, size = 0x400, scoped, tag = 'input window, operand 23, single buffered']
    %29 = vsyncpa [#allocation3], 0
    %30 = vsyncpa [#allocation5], 0
    %31 = vsyncpa [#allocation8], 0
    %32 = vsyncpa [#allocation11], 0
    %33 = vsyncpa [#allocation14], 0
    %34 = vsyncpa [#allocation17], 0
    %35 = vsyncpa [#allocation20], 0
    %36 = vsyncpa [#allocation23], 0
    // Predicated region
    $region2: #{model_forward.1} parent=1 // pred_check
      _
    $region3: #{model_forward.1} parent=1 // pred_check_branch
      %38 = sbr.rel (0) target = $region5
    $region4: #{model_forward.1} parent=1 // pred_region
      _
    $region5: #{model_forward.1} parent=1 // pred_fallthru
      _
    // Predicated region
    $region6: #{model_forward.1} parent=1 // pred_check
      _
    $region7: #{model_forward.1} parent=1 // pred_check_branch
      %40 = sbr.rel (0) target = $region9
    $region8: #{model_forward.1} parent=1 // pred_region
      %s42 = ssub.s32 2048, 2048
      %43 = vsyncadd [#allocation3], %s42
      %s44 = sshll.u32 [#allocation2], 4
      %s45 = int_to_ptr.vmem [resolvable:$true] %s44
      %50 = dma.hbm_to_vmem [thread:$0]  %s1, 2048, %s45, [#allocation3], 256, 256, 16
    $region9: #{model_forward.1} parent=1 // pred_fallthru
      _
    // Predicated region
    $region10: #{model_forward.1} parent=1 // pred_check
      _
    $region11: #{model_forward.1} parent=1 // pred_check_branch
      %52 = sbr.rel (0) target = $region13
    $region12: #{model_forward.1} parent=1 // pred_region
      %s54 = ssub.s32 32, 32
      %55 = vsyncadd [#allocation5], %s54
      %s57 = sshll.u32 [#allocation4], 4
      %s58 = int_to_ptr.vmem [resolvable:$true] %s57
      %60 = dma.hbm_to_vmem [thread:$0]  %s2, 32, %s58, [#allocation5]
    $region13: #{model_forward.1} parent=1 // pred_fallthru
      _
    // Predicated region
    $region14: #{model_forward.1} parent=1 // pred_check
      _
    $region15: #{model_forward.1} parent=1 // pred_check_branch
      %62 = sbr.rel (0) target = $region17
    $region16: #{model_forward.1} parent=1 // pred_region
      _
    $region17: #{model_forward.1} parent=1 // pred_fallthru
      _
    // Predicated region
    $region18: #{model_forward.1} parent=1 // pred_check
      _
    $region19: #{model_forward.1} parent=1 // pred_check_branch
      %64 = sbr.rel (0) target = $region21
    $region20: #{model_forward.1} parent=1 // pred_region
      _
    $region21: #{model_forward.1} parent=1 // pred_fallthru
      _
    // Predicated region
    $region22: #{model_forward.1} parent=1 // pred_check
      _
    $region23: #{model_forward.1} parent=1 // pred_check_branch
      %66 = sbr.rel (0) target = $region25
    $region24: #{model_forward.1} parent=1 // pred_region
      _
    $region25: #{model_forward.1} parent=1 // pred_fallthru
      _
    // Predicated region
    $region26: #{model_forward.1} parent=1 // pred_check
      _
    $region27: #{model_forward.1} parent=1 // pred_check_branch
      %68 = sbr.rel (0) target = $region29
    $region28: #{model_forward.1} parent=1 // pred_region
      %s70 = ssub.s32 192, 192
      %71 = vsyncadd [#allocation5], %s70
      %s73 = sshll.u32 [#allocation6], 4
      %s74 = int_to_ptr.vmem [resolvable:$true] %s73
      %76 = dma.hbm_to_vmem [thread:$0]  %s6, 192, %s74, [#allocation5]
    $region29: #{model_forward.1} parent=1 // pred_fallthru
      _
    // Predicated region
    $region30: #{model_forward.1} parent=1 // pred_check
      _
    $region31: #{model_forward.1} parent=1 // pred_check_branch
      %78 = sbr.rel (0) target = $region33
    $region32: #{model_forward.1} parent=1 // pred_region
      %s80 = ssub.s32 48, 48
      %81 = vsyncadd [#allocation8], %s80
      %s83 = sshll.u32 [#allocation7], 4
      %s84 = int_to_ptr.vmem [resolvable:$true] %s83
      %86 = dma.hbm_to_vmem [thread:$0]  %s7, 48, %s84, [#allocation8]
    $region33: #{model_forward.1} parent=1 // pred_fallthru
      _
    // Predicated region
    $region34: #{model_forward.1} parent=1 // pred_check
      _
    $region35: #{model_forward.1} parent=1 // pred_check_branch
      %88 = sbr.rel (0) target = $region37
    $region36: #{model_forward.1} parent=1 // pred_region
      _
    $region37: #{model_forward.1} parent=1 // pred_fallthru
      _
    // Predicated region
    $region38: #{model_forward.1} parent=1 // pred_check
      _
    $region39: #{model_forward.1} parent=1 // pred_check_branch
      %90 = sbr.rel (0) target = $region41
    $region40: #{model_forward.1} parent=1 // pred_region
      %s92 = ssub.s32 48, 48
      %93 = vsyncadd [#allocation8], %s92
      %s95 = sshll.u32 [#allocation9], 4
      %s96 = int_to_ptr.vmem [resolvable:$true] %s95
      %98 = dma.hbm_to_vmem [thread:$0]  %s9, 48, %s96, [#allocation8]
    $region41: #{model_forward.1} parent=1 // pred_fallthru
      _
    // Predicated region
    $region42: #{model_forward.1} parent=1 // pred_check
      _
    $region43: #{model_forward.1} parent=1 // pred_check_branch
      %100 = sbr.rel (0) target = $region45
    $region44: #{model_forward.1} parent=1 // pred_region
      %s102 = ssub.s32 2048, 2048
      %103 = vsyncadd [#allocation11], %s102
      %s104 = sshll.u32 [#allocation10], 4
      %s105 = int_to_ptr.vmem [resolvable:$true] %s104
      %110 = dma.hbm_to_vmem [thread:$0]  %s10, 2048, %s105, [#allocation11], 128, 128, 8
    $region45: #{model_forward.1} parent=1 // pred_fallthru
      _
    // Predicated region
    $region46: #{model_forward.1} parent=1 // pred_check
      _
    $region47: #{model_forward.1} parent=1 // pred_check_branch
      %112 = sbr.rel (0) target = $region49
    $region48: #{model_forward.1} parent=1 // pred_region
      %s114 = ssub.s32 16, 16
      %115 = vsyncadd [#allocation11], %s114
      %s117 = sshll.u32 [#allocation12], 4
      %s118 = int_to_ptr.vmem [resolvable:$true] %s117
      %120 = dma.hbm_to_vmem [thread:$0]  %s11, 16, %s118, [#allocation11]
    $region49: #{model_forward.1} parent=1 // pred_fallthru
      _
    // Predicated region
    $region50: #{model_forward.1} parent=1 // pred_check
      _
    $region51: #{model_forward.1} parent=1 // pred_check_branch
      %122 = sbr.rel (0) target = $region53
    $region52: #{model_forward.1} parent=1 // pred_region
      %s124 = ssub.s32 2048, 2048
      %125 = vsyncadd [#allocation14], %s124
      %s126 = sshll.u32 [#allocation13], 4
      %s127 = int_to_ptr.vmem [resolvable:$true] %s126
      %132 = dma.hbm_to_vmem [thread:$0]  %s12, 2048, %s127, [#allocation14], 128, 128, 8
    $region53: #{model_forward.1} parent=1 // pred_fallthru
      _
    // Predicated region
    $region54: #{model_forward.1} parent=1 // pred_check
      _
    $region55: #{model_forward.1} parent=1 // pred_check_branch
      %134 = sbr.rel (0) target = $region57
    $region56: #{model_forward.1} parent=1 // pred_region
      %s136 = ssub.s32 16, 16
      %137 = vsyncadd [#allocation14], %s136
      %s139 = sshll.u32 [#allocation15], 4
      %s140 = int_to_ptr.vmem [resolvable:$true] %s139
      %142 = dma.hbm_to_vmem [thread:$0]  %s13, 16, %s140, [#allocation14]
    $region57: #{model_forward.1} parent=1 // pred_fallthru
      _
    // Predicated region
    $region58: #{model_forward.1} parent=1 // pred_check
      _
    $region59: #{model_forward.1} parent=1 // pred_check_branch
      %144 = sbr.rel (0) target = $region61
    $region60: #{model_forward.1} parent=1 // pred_region
      %s146 = ssub.s32 2048, 2048
      %147 = vsyncadd [#allocation17], %s146
      %s148 = sshll.u32 [#allocation16], 4
      %s149 = int_to_ptr.vmem [resolvable:$true] %s148
      %154 = dma.hbm_to_vmem [thread:$0]  %s14, 2048, %s149, [#allocation17], 128, 128, 8
    $region61: #{model_forward.1} parent=1 // pred_fallthru
      _
    // Predicated region
    $region62: #{model_forward.1} parent=1 // pred_check
      _
    $region63: #{model_forward.1} parent=1 // pred_check_branch
      %156 = sbr.rel (0) target = $region65
    $region64: #{model_forward.1} parent=1 // pred_region
      %s158 = ssub.s32 16, 16
      %159 = vsyncadd [#allocation17], %s158
      %s161 = sshll.u32 [#allocation18], 4
      %s162 = int_to_ptr.vmem [resolvable:$true] %s161
      %164 = dma.hbm_to_vmem [thread:$0]  %s15, 16, %s162, [#allocation17]
    $region65: #{model_forward.1} parent=1 // pred_fallthru
      _
    // Predicated region
    $region66: #{model_forward.1} parent=1 // pred_check
      _
    $region67: #{model_forward.1} parent=1 // pred_check_branch
      %166 = sbr.rel (0) target = $region69
    $region68: #{model_forward.1} parent=1 // pred_region
      _
    $region69: #{model_forward.1} parent=1 // pred_fallthru
      _
    // Predicated region
    $region70: #{model_forward.1} parent=1 // pred_check
      _
    $region71: #{model_forward.1} parent=1 // pred_check_branch
      %168 = sbr.rel (0) target = $region73
    $region72: #{model_forward.1} parent=1 // pred_region
      %s170 = ssub.s32 32, 32
      %171 = vsyncadd [#allocation20], %s170
      %s173 = sshll.u32 [#allocation19], 4
      %s174 = int_to_ptr.vmem [resolvable:$true] %s173
      %176 = dma.hbm_to_vmem [thread:$0]  %s17, 32, %s174, [#allocation20]
    $region73: #{model_forward.1} parent=1 // pred_fallthru
      _
    // Predicated region
    $region74: #{model_forward.1} parent=1 // pred_check
      _
    $region75: #{model_forward.1} parent=1 // pred_check_branch
      %178 = sbr.rel (0) target = $region77
    $region76: #{model_forward.1} parent=1 // pred_region
      _
    $region77: #{model_forward.1} parent=1 // pred_fallthru
      _
    // Predicated region
    $region78: #{model_forward.1} parent=1 // pred_check
      _
    $region79: #{model_forward.1} parent=1 // pred_check_branch
      %180 = sbr.rel (0) target = $region81
    $region80: #{model_forward.1} parent=1 // pred_region
      %s182 = ssub.s32 16, 16
      %183 = vsyncadd [#allocation20], %s182
      %s185 = sshll.u32 [#allocation21], 4
      %s186 = int_to_ptr.vmem [resolvable:$true] %s185
      %188 = dma.hbm_to_vmem [thread:$0]  %s19, 16, %s186, [#allocation20]
    $region81: #{model_forward.1} parent=1 // pred_fallthru
      _
    // Predicated region
    $region82: #{model_forward.1} parent=1 // pred_check
      _
    $region83: #{model_forward.1} parent=1 // pred_check_branch
      %190 = sbr.rel (0) target = $region85
    $region84: #{model_forward.1} parent=1 // pred_region
      _
    $region85: #{model_forward.1} parent=1 // pred_fallthru
      _
    // Predicated region
    $region86: #{model_forward.1} parent=1 // pred_check
      _
    $region87: #{model_forward.1} parent=1 // pred_check_branch
      %192 = sbr.rel (0) target = $region89
    $region88: #{model_forward.1} parent=1 // pred_region
      %s194 = ssub.s32 16, 16
      %195 = vsyncadd [#allocation23], %s194
      %s197 = sshll.u32 [#allocation22], 4
      %s198 = int_to_ptr.vmem [resolvable:$true] %s197
      %200 = dma.hbm_to_vmem [thread:$0]  %s21, 16, %s198, [#allocation23]
    $region89: #{model_forward.1} parent=1 // pred_fallthru
      _
    // Predicated region
    $region90: #{model_forward.1} parent=1 // pred_check
      _
    $region91: #{model_forward.1} parent=1 // pred_check_branch
      %202 = sbr.rel (0) target = $region93
    $region92: #{model_forward.1} parent=1 // pred_region
      _
    $region93: #{model_forward.1} parent=1 // pred_fallthru
      _
    // Predicated region
    $region94: #{model_forward.1} parent=1 // pred_check
      _
    $region95: #{model_forward.1} parent=1 // pred_check_branch
      %204 = sbr.rel (0) target = $region97
    $region96: #{model_forward.1} parent=1 // pred_region
      %s206 = ssub.s32 16, 16
      %207 = vsyncadd [#allocation23], %s206
      %s209 = sshll.u32 [#allocation24], 4
      %s210 = int_to_ptr.vmem [resolvable:$true] %s209
      %212 = dma.hbm_to_vmem [thread:$0]  %s23, 16, %s210, [#allocation23]
    $region97: #{model_forward.1} parent=1 // pred_fallthru
      _
    // Predicated region
    $region98: #{model_forward.1} parent=1 // pred_check
      _
    $region99: #{model_forward.1} parent=1 // pred_check_branch
      %214 = sbr.rel (0) target = $region101
    $region100: #{model_forward.1} parent=1 // pred_region
      %215 = dma.done [#allocation3], 2048
    $region101: #{model_forward.1} parent=1 // pred_fallthru
      _
    // Predicated region
    $region102: #{model_forward.1} parent=1 // pred_check
      _
    $region103: #{model_forward.1} parent=1 // pred_check_branch
      %217 = sbr.rel (0) target = $region105
    $region104: #{model_forward.1} parent=1 // pred_region
      %218 = dma.done [#allocation5], 32
    $region105: #{model_forward.1} parent=1 // pred_fallthru
      _
    // Predicated region
    $region106: #{model_forward.1} parent=1 // pred_check
      _
    $region107: #{model_forward.1} parent=1 // pred_check_branch
      %220 = sbr.rel (0) target = $region109
    $region108: #{model_forward.1} parent=1 // pred_region
      %221 = dma.done [#allocation5], 192
    $region109: #{model_forward.1} parent=1 // pred_fallthru
      _
    // Predicated region
    $region110: #{model_forward.1} parent=1 // pred_check
      _
    $region111: #{model_forward.1} parent=1 // pred_check_branch
      %223 = sbr.rel (0) target = $region113
    $region112: #{model_forward.1} parent=1 // pred_region
      %224 = dma.done [#allocation8], 48
    $region113: #{model_forward.1} parent=1 // pred_fallthru
      _
    // Predicated region
    $region114: #{model_forward.1} parent=1 // pred_check
      _
    $region115: #{model_forward.1} parent=1 // pred_check_branch
      %226 = sbr.rel (0) target = $region117
    $region116: #{model_forward.1} parent=1 // pred_region
      %227 = dma.done [#allocation8], 48
    $region117: #{model_forward.1} parent=1 // pred_fallthru
      _
    // Predicated region
    $region118: #{model_forward.1} parent=1 // pred_check
      _
    $region119: #{model_forward.1} parent=1 // pred_check_branch
      %229 = sbr.rel (0) target = $region121
    $region120: #{model_forward.1} parent=1 // pred_region
      %230 = dma.done [#allocation11], 2048
    $region121: #{model_forward.1} parent=1 // pred_fallthru
      _
    // Predicated region
    $region122: #{model_forward.1} parent=1 // pred_check
      _
    $region123: #{model_forward.1} parent=1 // pred_check_branch
      %232 = sbr.rel (0) target = $region125
    $region124: #{model_forward.1} parent=1 // pred_region
      %233 = dma.done [#allocation11], 16
    $region125: #{model_forward.1} parent=1 // pred_fallthru
      _
    // Predicated region
    $region126: #{model_forward.1} parent=1 // pred_check
      _
    $region127: #{model_forward.1} parent=1 // pred_check_branch
      %235 = sbr.rel (0) target = $region129
    $region128: #{model_forward.1} parent=1 // pred_region
      %236 = dma.done [#allocation14], 2048
    $region129: #{model_forward.1} parent=1 // pred_fallthru
      _
    // Predicated region
    $region130: #{model_forward.1} parent=1 // pred_check
      _
    $region131: #{model_forward.1} parent=1 // pred_check_branch
      %238 = sbr.rel (0) target = $region133
    $region132: #{model_forward.1} parent=1 // pred_region
      %239 = dma.done [#allocation14], 16
    $region133: #{model_forward.1} parent=1 // pred_fallthru
      _
    // Predicated region
    $region134: #{model_forward.1} parent=1 // pred_check
      _
    $region135: #{model_forward.1} parent=1 // pred_check_branch
      %241 = sbr.rel (0) target = $region137
    $region136: #{model_forward.1} parent=1 // pred_region
      %242 = dma.done [#allocation17], 2048
    $region137: #{model_forward.1} parent=1 // pred_fallthru
      _
    // Predicated region
    $region138: #{model_forward.1} parent=1 // pred_check
      _
    $region139: #{model_forward.1} parent=1 // pred_check_branch
      %244 = sbr.rel (0) target = $region141
    $region140: #{model_forward.1} parent=1 // pred_region
      %245 = dma.done [#allocation17], 16
    $region141: #{model_forward.1} parent=1 // pred_fallthru
      _
    // Predicated region
    $region142: #{model_forward.1} parent=1 // pred_check
      _
    $region143: #{model_forward.1} parent=1 // pred_check_branch
      %247 = sbr.rel (0) target = $region145
    $region144: #{model_forward.1} parent=1 // pred_region
      %248 = dma.done [#allocation20], 32
    $region145: #{model_forward.1} parent=1 // pred_fallthru
      _
    // Predicated region
    $region146: #{model_forward.1} parent=1 // pred_check
      _
    $region147: #{model_forward.1} parent=1 // pred_check_branch
      %250 = sbr.rel (0) target = $region149
    $region148: #{model_forward.1} parent=1 // pred_region
      %251 = dma.done [#allocation20], 16
    $region149: #{model_forward.1} parent=1 // pred_fallthru
      _
    // Predicated region
    $region150: #{model_forward.1} parent=1 // pred_check
      _
    $region151: #{model_forward.1} parent=1 // pred_check_branch
      %253 = sbr.rel (0) target = $region153
    $region152: #{model_forward.1} parent=1 // pred_region
      %254 = dma.done [#allocation23], 16
    $region153: #{model_forward.1} parent=1 // pred_fallthru
      _
    // Predicated region
    $region154: #{model_forward.1} parent=1 // pred_check
      _
    $region155: #{model_forward.1} parent=1 // pred_check_branch
      %256 = sbr.rel (0) target = $region157
    $region156: #{model_forward.1} parent=1 // pred_region
      %257 = dma.done [#allocation23], 16
    $region157: #{model_forward.1} parent=1 // pred_fallthru
      _
    %v258 = vld [vmem:[%s0] sm:$0x3]
    %v259 = vld [vmem:[#allocation2] sm:$0xff]
    %v260 = vld [vmem:[#allocation2 + $0x8] sm:$0xff]
    %v261 = vld [vmem:[#allocation2 + $0x10] sm:$0xff]
    %v262 = vld [vmem:[#allocation2 + $0x18] sm:$0xff]
    %v263 = vld [vmem:[#allocation2 + $0x20] sm:$0xff]
    %v264 = vld [vmem:[#allocation2 + $0x28] sm:$0xff]
    %v265 = vld [vmem:[#allocation2 + $0x30] sm:$0xff]
    %v266 = vld [vmem:[#allocation2 + $0x38] sm:$0xff]
    %v267 = vld [vmem:[#allocation2 + $0x40] sm:$0xff]
    %v268 = vld [vmem:[#allocation2 + $0x48] sm:$0xff]
    %v269 = vld [vmem:[#allocation2 + $0x50] sm:$0xff]
    %v270 = vld [vmem:[#allocation2 + $0x58] sm:$0xff]
    %v271 = vld [vmem:[#allocation2 + $0x60] sm:$0xff]
    %v272 = vld [vmem:[#allocation2 + $0x68] sm:$0xff]
    %v273 = vld [vmem:[#allocation2 + $0x70] sm:$0xff]
    %v274 = vld [vmem:[#allocation2 + $0x78] sm:$0xff]
    %v275 = vld [vmem:[#allocation4] sm:$0x3]
    %v277 = vlaneseq
    %v278 = vshrl.u32 %v277, 7
    %v279 = vsub.s32 0, %v278
    %v280 = vrot.slane %v275, %v279
    %v281 = vlaneseq
    %v282 = vshrl.u32 %v281, 7
    %v283 = vsub.s32 1, %v282
    %v284 = vrot.slane %v275, %v283
    %vm287 = vcmask 523264
    %v289 = vsel %vm287, %v258, 0
    %291 = vmatprep.subr.mxu0 0.0
    %292 = vmatpush1.msra.mxu0 0.0
    %293 = vmatprep.subr.mxu0 0.0
    %294 = vmatpush1.msra.mxu0 0.0
    %295 = vmatprep.subr.mxu0 0.0
    %296 = vmatpush1.msra.mxu0 0.0
    %297 = vmatprep.subr.mxu0 0.0
    %298 = vmatpush1.msra.mxu0 0.0
    %299 = vmatprep.subr.mxu0 0.0
    %300 = vmatpush1.msra.mxu0 0.0
    %301 = vmatprep.subr.mxu0 0.0
    %302 = vmatpush1.msra.mxu0 0.0
    %303 = vmatprep.subr.mxu0 0.0
    %304 = vmatpush1.msra.mxu0 0.0
    %305 = vmatprep.subr.mxu0 0.0
    %306 = vmatpush1.msra.mxu0 0.0
    %307 = vmatprep.subr.mxu0 %v274
    %308 = vmatpush1.msra.mxu0 %v273
    %309 = vmatprep.subr.mxu0 %v272
    %310 = vmatpush1.msra.mxu0 %v271
    %311 = vmatprep.subr.mxu0 %v270
    %312 = vmatpush1.msra.mxu0 %v269
    %313 = vmatprep.subr.mxu0 %v268
    %314 = vmatpush1.msra.mxu0 %v267
    %315 = vmatprep.subr.mxu0 %v266
    %316 = vmatpush1.msra.mxu0 %v265
    %317 = vmatprep.subr.mxu0 %v264
    %318 = vmatpush1.msra.mxu0 %v263
    %319 = vmatprep.subr.mxu0 %v262
    %320 = vmatpush1.msra.mxu0 %v261
    %321 = vmatprep.subr.mxu0 %v260
    %322 = vmatpush1.msra.mxu0 %v259
    %323 = vmatprep.subr.mxu0 0.0
    %324 = vmatpush2.msra.mxu0 0.0
    %325 = vmatprep.subr.mxu0 0.0
    %326 = vmatpush2.msra.mxu0 0.0
    %327 = vmatprep.subr.mxu0 0.0
    %328 = vmatpush2.msra.mxu0 0.0
    %329 = vmatprep.subr.mxu0 0.0
    %330 = vmatpush2.msra.mxu0 0.0
    %331 = vmatprep.subr.mxu0 0.0
    %332 = vmatpush2.msra.mxu0 0.0
    %333 = vmatprep.subr.mxu0 0.0
    %334 = vmatpush2.msra.mxu0 0.0
    %335 = vmatprep.subr.mxu0 0.0
    %336 = vmatpush2.msra.mxu0 0.0
    %337 = vmatprep.subr.mxu0 0.0
    %338 = vmatpush2.msra.mxu0 0.0
    %339 = vmatprep.subr.mxu0 0.0
    %340 = vmatpush2.msra.mxu0 0.0
    %341 = vmatprep.subr.mxu0 0.0
    %342 = vmatpush2.msra.mxu0 0.0
    %343 = vmatprep.subr.mxu0 0.0
    %344 = vmatpush2.msra.mxu0 0.0
    %345 = vmatprep.subr.mxu0 0.0
    %346 = vmatpush2.msra.mxu0 0.0
    %347 = vmatprep.subr.mxu0 0.0
    %348 = vmatpush2.msra.mxu0 0.0
    %349 = vmatprep.subr.mxu0 0.0
    %350 = vmatpush2.msra.mxu0 0.0
    %351 = vmatprep.subr.mxu0 0.0
    %352 = vmatpush2.msra.mxu0 0.0
    %353 = vmatprep.subr.mxu0 0.0
    %354 = vmatpush2.msra.mxu0 0.0
    %355 = vmatprep.mubr.f32.mxu0 0.0
    %356 = vmatmul.mubr.f32.gmra.mxu0 %v289
    %v357 = vpop.f32.mrf.mxu0
    %v358 = vadd.f32 %v280, %v357
    %v359 = vpop.f32.mrf.mxu0
    %v360 = vadd.f32 %v284, %v359
    %361 = vdwg.mxu0
    %v362 = vmax.f32 %v358, 0.0
    %v363 = vmax.f32 %v360, 0.0
    %v364 = vld [vmem:[%s3] sm:$0xff]
    %v365 = vld [vmem:[%s3 + $0x8] sm:$0xff]
    %v366 = vld [vmem:[%s3 + $0x10] sm:$0xff]
    %v367 = vld [vmem:[%s3 + $0x18] sm:$0xff]
    %v368 = vld [vmem:[%s3 + $0x20] sm:$0xff]
    %v369 = vld [vmem:[%s3 + $0x28] sm:$0xff]
    %v370 = vld [vmem:[%s3 + $0x30] sm:$0xff]
    %v371 = vld [vmem:[%s3 + $0x38] sm:$0xff]
    %v372 = vld [vmem:[%s3 + $0x40] sm:$0xff]
    %v373 = vld [vmem:[%s3 + $0x48] sm:$0xff]
    %v374 = vld [vmem:[%s3 + $0x50] sm:$0xff]
    %v375 = vld [vmem:[%s3 + $0x58] sm:$0xff]
    %v376 = vld [vmem:[%s3 + $0x60] sm:$0xff]
    %v377 = vld [vmem:[%s3 + $0x68] sm:$0xff]
    %v378 = vld [vmem:[%s3 + $0x70] sm:$0xff]
    %v379 = vld [vmem:[%s3 + $0x78] sm:$0xff]
    %v380 = vld [vmem:[%s3 + $0x80] sm:$0xff]
    %v381 = vld [vmem:[%s3 + $0x88] sm:$0xff]
    %v382 = vld [vmem:[%s3 + $0x90] sm:$0xff]
    %v383 = vld [vmem:[%s3 + $0x98] sm:$0xff]
    %v384 = vld [vmem:[%s3 + $0xa0] sm:$0xff]
    %v385 = vld [vmem:[%s3 + $0xa8] sm:$0xff]
    %v386 = vld [vmem:[%s3 + $0xb0] sm:$0xff]
    %v387 = vld [vmem:[%s3 + $0xb8] sm:$0xff]
    %v388 = vld [vmem:[%s3 + $0xc0] sm:$0xff]
    %v389 = vld [vmem:[%s3 + $0xc8] sm:$0xff]
    %v390 = vld [vmem:[%s3 + $0xd0] sm:$0xff]
    %v391 = vld [vmem:[%s3 + $0xd8] sm:$0xff]
    %v392 = vld [vmem:[%s3 + $0xe0] sm:$0xff]
    %v393 = vld [vmem:[%s3 + $0xe8] sm:$0xff]
    %v394 = vld [vmem:[%s4] sm:$0x1]
    %v396 = vlaneseq
    %v397 = vshrl.u32 %v396, 7
    %v398 = vsub.s32 0, %v397
    %v399 = vrot.slane %v394, %v398
    %vm401 = vcmask 916480
    %v403 = vsel %vm401, %v363, 0
    %405 = vmatprep.subr.mxu0 0.0
    %406 = vmatpush1.msra.mxu0 %v379
    %407 = vmatprep.subr.mxu0 0.0
    %408 = vmatpush1.msra.mxu0 %v378
    %409 = vmatprep.subr.mxu0 0.0
    %410 = vmatpush1.msra.mxu0 %v377
    %411 = vmatprep.subr.mxu0 0.0
    %412 = vmatpush1.msra.mxu0 %v376
    %413 = vmatprep.subr.mxu0 0.0
    %414 = vmatpush1.msra.mxu0 %v375
    %415 = vmatprep.subr.mxu0 0.0
    %416 = vmatpush1.msra.mxu0 %v374
    %417 = vmatprep.subr.mxu0 0.0
    %418 = vmatpush1.msra.mxu0 %v373
    %419 = vmatprep.subr.mxu0 0.0
    %420 = vmatpush1.msra.mxu0 %v372
    %421 = vmatprep.subr.mxu0 0.0
    %422 = vmatpush1.msra.mxu0 %v371
    %423 = vmatprep.subr.mxu0 0.0
    %424 = vmatpush1.msra.mxu0 %v370
    %425 = vmatprep.subr.mxu0 0.0
    %426 = vmatpush1.msra.mxu0 %v369
    %427 = vmatprep.subr.mxu0 0.0
    %428 = vmatpush1.msra.mxu0 %v368
    %429 = vmatprep.subr.mxu0 0.0
    %430 = vmatpush1.msra.mxu0 %v367
    %431 = vmatprep.subr.mxu0 0.0
    %432 = vmatpush1.msra.mxu0 %v366
    %433 = vmatprep.subr.mxu0 0.0
    %434 = vmatpush1.msra.mxu0 %v365
    %435 = vmatprep.subr.mxu0 0.0
    %436 = vmatpush1.msra.mxu0 %v364
    %437 = vmatprep.subr.mxu0 0.0
    %438 = vmatpush2.msra.mxu0 0.0
    %439 = vmatprep.subr.mxu0 0.0
    %440 = vmatpush2.msra.mxu0 0.0
    %441 = vmatprep.subr.mxu0 0.0
    %442 = vmatpush2.msra.mxu0 %v393
    %443 = vmatprep.subr.mxu0 0.0
    %444 = vmatpush2.msra.mxu0 %v392
    %445 = vmatprep.subr.mxu0 0.0
    %446 = vmatpush2.msra.mxu0 %v391
    %447 = vmatprep.subr.mxu0 0.0
    %448 = vmatpush2.msra.mxu0 %v390
    %449 = vmatprep.subr.mxu0 0.0
    %450 = vmatpush2.msra.mxu0 %v389
    %451 = vmatprep.subr.mxu0 0.0
    %452 = vmatpush2.msra.mxu0 %v388
    %453 = vmatprep.subr.mxu0 0.0
    %454 = vmatpush2.msra.mxu0 %v387
    %455 = vmatprep.subr.mxu0 0.0
    %456 = vmatpush2.msra.mxu0 %v386
    %457 = vmatprep.subr.mxu0 0.0
    %458 = vmatpush2.msra.mxu0 %v385
    %459 = vmatprep.subr.mxu0 0.0
    %460 = vmatpush2.msra.mxu0 %v384
    %461 = vmatprep.subr.mxu0 0.0
    %462 = vmatpush2.msra.mxu0 %v383
    %463 = vmatprep.subr.mxu0 0.0
    %464 = vmatpush2.msra.mxu0 %v382
    %465 = vmatprep.subr.mxu0 0.0
    %466 = vmatpush2.msra.mxu0 %v381
    %467 = vmatprep.subr.mxu0 0.0
    %468 = vmatpush2.msra.mxu0 %v380
    %469 = vmatprep.mubr.f32.mxu0 %v403
    %470 = vmatmul.mubr.f32.gmra.mxu0 %v362
    %v471 = vpop.f32.mrf.mxu0
    %v472 = vadd.f32 %v399, %v471
    %v473 = vpop.f32.mrf.mxu0
    %474 = vdwg.mxu0
    %v475 = vld [vmem:[%s5] sm:$0xff]
    %v476 = vld [vmem:[%s5 + $0x8] sm:$0xff]
    %v477 = vld [vmem:[%s5 + $0x10] sm:$0xff]
    %v478 = vld [vmem:[%s5 + $0x18] sm:$0xff]
    %v479 = vld [vmem:[%s5 + $0x20] sm:$0xff]
    %v480 = vld [vmem:[%s5 + $0x28] sm:$0xff]
    %v481 = vld [vmem:[%s5 + $0x30] sm:$0xff]
    %v482 = vld [vmem:[%s5 + $0x38] sm:$0xff]
    %v483 = vld [vmem:[%s5 + $0x40] sm:$0xff]
    %v484 = vld [vmem:[%s5 + $0x48] sm:$0xff]
    %v485 = vld [vmem:[%s5 + $0x50] sm:$0xff]
    %v486 = vld [vmem:[%s5 + $0x58] sm:$0xff]
    %v487 = vld [vmem:[%s5 + $0x60] sm:$0xff]
    %v488 = vld [vmem:[%s5 + $0x68] sm:$0xff]
    %v489 = vld [vmem:[%s5 + $0x70] sm:$0xff]
    %v490 = vld [vmem:[%s5 + $0x78] sm:$0xff]
    %v491 = vld [vmem:[%s5 + $0x80] sm:$0xff]
    %v492 = vld [vmem:[%s5 + $0x88] sm:$0xff]
    %v493 = vld [vmem:[%s5 + $0x90] sm:$0xff]
    %v494 = vld [vmem:[%s5 + $0x98] sm:$0xff]
    %v495 = vld [vmem:[%s5 + $0xa0] sm:$0xff]
    %v496 = vld [vmem:[%s5 + $0xa8] sm:$0xff]
    %v497 = vld [vmem:[%s5 + $0xb0] sm:$0xff]
    %v498 = vld [vmem:[%s5 + $0xb8] sm:$0xff]
    %v499 = vld [vmem:[#allocation6] sm:$0xff]
    %v500 = vld [vmem:[#allocation6 + $0x8] sm:$0xf]
    %v503 = vcombine.high %v499, %v499
    %vm504 = vcmask 31744
    %v506 = vsel %vm504, %v472, 0
    %vm508 = vcmask 1043456
    %v509 = vsel %vm508, %v499, 0
    %v511 = vsel %vm508, %v503, 0
    %v513 = vsel %vm508, %v500, 0
    %515 = vmatprep.subr.mxu0 0.0
    %516 = vmatpush1.msra.mxu0 0.0
    %517 = vmatprep.subr.mxu0 0.0
    %518 = vmatpush1.msra.mxu0 0.0
    %519 = vmatprep.subr.mxu0 0.0
    %520 = vmatpush1.msra.mxu0 0.0
    %521 = vmatprep.subr.mxu0 0.0
    %522 = vmatpush1.msra.mxu0 0.0
    %523 = vmatprep.subr.mxu0 0.0
    %524 = vmatpush1.msra.mxu0 0.0
    %525 = vmatprep.subr.mxu0 0.0
    %526 = vmatpush1.msra.mxu0 0.0
    %527 = vmatprep.subr.mxu0 0.0
    %528 = vmatpush1.msra.mxu0 0.0
    %529 = vmatprep.subr.mxu0 0.0
    %530 = vmatpush1.msra.mxu0 0.0
    %531 = vmatprep.subr.mxu0 0.0
    %532 = vmatpush1.msra.mxu0 0.0
    %533 = vmatprep.subr.mxu0 0.0
    %534 = vmatpush1.msra.mxu0 0.0
    %535 = vmatprep.subr.mxu0 0.0
    %536 = vmatpush1.msra.mxu0 0.0
    %537 = vmatprep.subr.mxu0 0.0
    %538 = vmatpush1.msra.mxu0 0.0
    %539 = vmatprep.subr.mxu0 0.0
    %540 = vmatpush1.msra.mxu0 0.0
    %541 = vmatprep.subr.mxu0 0.0
    %542 = vmatpush1.msra.mxu0 0.0
    %543 = vmatprep.subr.mxu0 0.0
    %544 = vmatpush1.msra.mxu0 0.0
    %545 = vmatprep.subr.mxu0 %v511
    %546 = vmatpush1.msra.mxu0 %v509
    %547 = vmatprep.subr.mxu0 0.0
    %548 = vmatpush2.msra.mxu0 0.0
    %549 = vmatprep.subr.mxu0 0.0
    %550 = vmatpush2.msra.mxu0 0.0
    %551 = vmatprep.subr.mxu0 0.0
    %552 = vmatpush2.msra.mxu0 0.0
    %553 = vmatprep.subr.mxu0 0.0
    %554 = vmatpush2.msra.mxu0 0.0
    %555 = vmatprep.subr.mxu0 0.0
    %556 = vmatpush2.msra.mxu0 0.0
    %557 = vmatprep.subr.mxu0 0.0
    %558 = vmatpush2.msra.mxu0 0.0
    %559 = vmatprep.subr.mxu0 0.0
    %560 = vmatpush2.msra.mxu0 0.0
    %561 = vmatprep.subr.mxu0 0.0
    %562 = vmatpush2.msra.mxu0 0.0
    %563 = vmatprep.subr.mxu0 0.0
    %564 = vmatpush2.msra.mxu0 0.0
    %565 = vmatprep.subr.mxu0 0.0
    %566 = vmatpush2.msra.mxu0 0.0
    %567 = vmatprep.subr.mxu0 0.0
    %568 = vmatpush2.msra.mxu0 0.0
    %569 = vmatprep.subr.mxu0 0.0
    %570 = vmatpush2.msra.mxu0 0.0
    %571 = vmatprep.subr.mxu0 0.0
    %572 = vmatpush2.msra.mxu0 0.0
    %573 = vmatprep.subr.mxu0 0.0
    %574 = vmatpush2.msra.mxu0 0.0
    %575 = vmatprep.subr.mxu0 0.0
    %576 = vmatpush2.msra.mxu0 0.0
    %577 = vmatprep.subr.mxu0 0.0
    %578 = vmatpush2.msra.mxu0 0.0
    %579 = vmatprep.mubr.f32.mxu0 0.0
    %580 = vmatmul.mubr.f32.gmra.mxu0 %v506
    %v581 = vpop.f32.mrf.mxu0
    %v582 = vadd.f32 0.0, %v581
    %v583 = vpop.f32.mrf.mxu0
    %v584 = vadd.f32 0.0, %v583
    %585 = vdwg.mxu0
    %586 = vmatprep.subr.mxu0 0.0
    %587 = vmatpush1.msra.mxu0 0.0
    %588 = vmatprep.subr.mxu0 0.0
    %589 = vmatpush1.msra.mxu0 0.0
    %590 = vmatprep.subr.mxu0 0.0
    %591 = vmatpush1.msra.mxu0 0.0
    %592 = vmatprep.subr.mxu0 0.0
    %593 = vmatpush1.msra.mxu0 0.0
    %594 = vmatprep.subr.mxu0 0.0
    %595 = vmatpush1.msra.mxu0 0.0
    %596 = vmatprep.subr.mxu0 0.0
    %597 = vmatpush1.msra.mxu0 0.0
    %598 = vmatprep.subr.mxu0 0.0
    %599 = vmatpush1.msra.mxu0 0.0
    %600 = vmatprep.subr.mxu0 0.0
    %601 = vmatpush1.msra.mxu0 0.0
    %602 = vmatprep.subr.mxu0 0.0
    %603 = vmatpush1.msra.mxu0 0.0
    %604 = vmatprep.subr.mxu0 0.0
    %605 = vmatpush1.msra.mxu0 0.0
    %606 = vmatprep.subr.mxu0 0.0
    %607 = vmatpush1.msra.mxu0 0.0
    %608 = vmatprep.subr.mxu0 0.0
    %609 = vmatpush1.msra.mxu0 0.0
    %610 = vmatprep.subr.mxu0 0.0
    %611 = vmatpush1.msra.mxu0 0.0
    %612 = vmatprep.subr.mxu0 0.0
    %613 = vmatpush1.msra.mxu0 0.0
    %614 = vmatprep.subr.mxu0 0.0
    %615 = vmatpush1.msra.mxu0 0.0
    %616 = vmatprep.subr.mxu0 0.0
    %617 = vmatpush1.msra.mxu0 %v513
    %618 = vmatprep.subr.mxu0 0.0
    %619 = vmatpush2.msra.mxu0 0.0
    %620 = vmatprep.subr.mxu0 0.0
    %621 = vmatpush2.msra.mxu0 0.0
    %622 = vmatprep.subr.mxu0 0.0
    %623 = vmatpush2.msra.mxu0 0.0
    %624 = vmatprep.subr.mxu0 0.0
    %625 = vmatpush2.msra.mxu0 0.0
    %626 = vmatprep.subr.mxu0 0.0
    %627 = vmatpush2.msra.mxu0 0.0
    %628 = vmatprep.subr.mxu0 0.0
    %629 = vmatpush2.msra.mxu0 0.0
    %630 = vmatprep.subr.mxu0 0.0
    %631 = vmatpush2.msra.mxu0 0.0
    %632 = vmatprep.subr.mxu0 0.0
    %633 = vmatpush2.msra.mxu0 0.0
    %634 = vmatprep.subr.mxu0 0.0
    %635 = vmatpush2.msra.mxu0 0.0
    %636 = vmatprep.subr.mxu0 0.0
    %637 = vmatpush2.msra.mxu0 0.0
    %638 = vmatprep.subr.mxu0 0.0
    %639 = vmatpush2.msra.mxu0 0.0
    %640 = vmatprep.subr.mxu0 0.0
    %641 = vmatpush2.msra.mxu0 0.0
    %642 = vmatprep.subr.mxu0 0.0
    %643 = vmatpush2.msra.mxu0 0.0
    %644 = vmatprep.subr.mxu0 0.0
    %645 = vmatpush2.msra.mxu0 0.0
    %646 = vmatprep.subr.mxu0 0.0
    %647 = vmatpush2.msra.mxu0 0.0
    %648 = vmatprep.subr.mxu0 0.0
    %649 = vmatpush2.msra.mxu0 0.0
    %650 = vmatprep.mubr.f32.mxu0 0.0
    %651 = vmatmul.mubr.f32.gmra.mxu0 %v506
    %v652 = vpop.f32.mrf.mxu0
    %v653 = vadd.f32 0.0, %v652
    %v654 = vpop.f32.mrf.mxu0
    %655 = vdwg.mxu0
    %656 = vmatprep.subr.mxu0 0.0
    %657 = vmatpush1.msra.mxu0 0.0
    %658 = vmatprep.subr.mxu0 0.0
    %659 = vmatpush1.msra.mxu0 0.0
    %660 = vmatprep.subr.mxu0 0.0
    %661 = vmatpush1.msra.mxu0 0.0
    %662 = vmatprep.subr.mxu0 0.0
    %663 = vmatpush1.msra.mxu0 0.0
    %664 = vmatprep.subr.mxu0 0.0
    %665 = vmatpush1.msra.mxu0 0.0
    %666 = vmatprep.subr.mxu0 0.0
    %667 = vmatpush1.msra.mxu0 0.0
    %668 = vmatprep.subr.mxu0 0.0
    %669 = vmatpush1.msra.mxu0 0.0
    %670 = vmatprep.subr.mxu0 0.0
    %671 = vmatpush1.msra.mxu0 0.0
    %672 = vmatprep.subr.mxu0 %v497
    %673 = vmatpush1.msra.mxu0 %v496
    %674 = vmatprep.subr.mxu0 %v494
    %675 = vmatpush1.msra.mxu0 %v493
    %676 = vmatprep.subr.mxu0 %v491
    %677 = vmatpush1.msra.mxu0 %v490
    %678 = vmatprep.subr.mxu0 %v488
    %679 = vmatpush1.msra.mxu0 %v487
    %680 = vmatprep.subr.mxu0 %v485
    %681 = vmatpush1.msra.mxu0 %v484
    %682 = vmatprep.subr.mxu0 %v482
    %683 = vmatpush1.msra.mxu0 %v481
    %684 = vmatprep.subr.mxu0 %v479
    %685 = vmatpush1.msra.mxu0 %v478
    %686 = vmatprep.subr.mxu0 %v476
    %687 = vmatpush1.msra.mxu0 %v475
    %688 = vmatprep.subr.mxu0 0.0
    %689 = vmatpush2.msra.mxu0 0.0
    %690 = vmatprep.subr.mxu0 0.0
    %691 = vmatpush2.msra.mxu0 0.0
    %692 = vmatprep.subr.mxu0 0.0
    %693 = vmatpush2.msra.mxu0 0.0
    %694 = vmatprep.subr.mxu0 0.0
    %695 = vmatpush2.msra.mxu0 0.0
    %696 = vmatprep.subr.mxu0 0.0
    %697 = vmatpush2.msra.mxu0 0.0
    %698 = vmatprep.subr.mxu0 0.0
    %699 = vmatpush2.msra.mxu0 0.0
    %700 = vmatprep.subr.mxu0 0.0
    %701 = vmatpush2.msra.mxu0 0.0
    %702 = vmatprep.subr.mxu0 0.0
    %703 = vmatpush2.msra.mxu0 0.0
    %704 = vmatprep.subr.mxu0 0.0
    %705 = vmatpush2.msra.mxu0 0.0
    %706 = vmatprep.subr.mxu0 0.0
    %707 = vmatpush2.msra.mxu0 0.0
    %708 = vmatprep.subr.mxu0 0.0
    %709 = vmatpush2.msra.mxu0 0.0
    %710 = vmatprep.subr.mxu0 0.0
    %711 = vmatpush2.msra.mxu0 0.0
    %712 = vmatprep.subr.mxu0 0.0
    %713 = vmatpush2.msra.mxu0 0.0
    %714 = vmatprep.subr.mxu0 0.0
    %715 = vmatpush2.msra.mxu0 0.0
    %716 = vmatprep.subr.mxu0 0.0
    %717 = vmatpush2.msra.mxu0 0.0
    %718 = vmatprep.subr.mxu0 0.0
    %719 = vmatpush2.msra.mxu0 0.0
    %720 = vmatprep.mubr.f32.mxu0 0.0
    %721 = vmatmul.mubr.f32.gmra.mxu0 %v289
    %v722 = vpop.f32.mrf.mxu0
    %v723 = vadd.f32 %v582, %v722
    %v724 = vpop.f32.mrf.mxu0
    %v725 = vadd.f32 %v584, %v724
    %726 = vdwg.mxu0
    %727 = vmatprep.subr.mxu0 0.0
    %728 = vmatpush1.msra.mxu0 0.0
    %729 = vmatprep.subr.mxu0 0.0
    %730 = vmatpush1.msra.mxu0 0.0
    %731 = vmatprep.subr.mxu0 0.0
    %732 = vmatpush1.msra.mxu0 0.0
    %733 = vmatprep.subr.mxu0 0.0
    %734 = vmatpush1.msra.mxu0 0.0
    %735 = vmatprep.subr.mxu0 0.0
    %736 = vmatpush1.msra.mxu0 0.0
    %737 = vmatprep.subr.mxu0 0.0
    %738 = vmatpush1.msra.mxu0 0.0
    %739 = vmatprep.subr.mxu0 0.0
    %740 = vmatpush1.msra.mxu0 0.0
    %741 = vmatprep.subr.mxu0 0.0
    %742 = vmatpush1.msra.mxu0 0.0
    %743 = vmatprep.subr.mxu0 0.0
    %744 = vmatpush1.msra.mxu0 %v498
    %745 = vmatprep.subr.mxu0 0.0
    %746 = vmatpush1.msra.mxu0 %v495
    %747 = vmatprep.subr.mxu0 0.0
    %748 = vmatpush1.msra.mxu0 %v492
    %749 = vmatprep.subr.mxu0 0.0
    %750 = vmatpush1.msra.mxu0 %v489
    %751 = vmatprep.subr.mxu0 0.0
    %752 = vmatpush1.msra.mxu0 %v486
    %753 = vmatprep.subr.mxu0 0.0
    %754 = vmatpush1.msra.mxu0 %v483
    %755 = vmatprep.subr.mxu0 0.0
    %756 = vmatpush1.msra.mxu0 %v480
    %757 = vmatprep.subr.mxu0 0.0
    %758 = vmatpush1.msra.mxu0 %v477
    %759 = vmatprep.subr.mxu0 0.0
    %760 = vmatpush2.msra.mxu0 0.0
    %761 = vmatprep.subr.mxu0 0.0
    %762 = vmatpush2.msra.mxu0 0.0
    %763 = vmatprep.subr.mxu0 0.0
    %764 = vmatpush2.msra.mxu0 0.0
    %765 = vmatprep.subr.mxu0 0.0
    %766 = vmatpush2.msra.mxu0 0.0
    %767 = vmatprep.subr.mxu0 0.0
    %768 = vmatpush2.msra.mxu0 0.0
    %769 = vmatprep.subr.mxu0 0.0
    %770 = vmatpush2.msra.mxu0 0.0
    %771 = vmatprep.subr.mxu0 0.0
    %772 = vmatpush2.msra.mxu0 0.0
    %773 = vmatprep.subr.mxu0 0.0
    %774 = vmatpush2.msra.mxu0 0.0
    %775 = vmatprep.subr.mxu0 0.0
    %776 = vmatpush2.msra.mxu0 0.0
    %777 = vmatprep.subr.mxu0 0.0
    %778 = vmatpush2.msra.mxu0 0.0
    %779 = vmatprep.subr.mxu0 0.0
    %780 = vmatpush2.msra.mxu0 0.0
    %781 = vmatprep.subr.mxu0 0.0
    %782 = vmatpush2.msra.mxu0 0.0
    %783 = vmatprep.subr.mxu0 0.0
    %784 = vmatpush2.msra.mxu0 0.0
    %785 = vmatprep.subr.mxu0 0.0
    %786 = vmatpush2.msra.mxu0 0.0
    %787 = vmatprep.subr.mxu0 0.0
    %788 = vmatpush2.msra.mxu0 0.0
    %789 = vmatprep.subr.mxu0 0.0
    %790 = vmatpush2.msra.mxu0 0.0
    %791 = vmatprep.mubr.f32.mxu0 0.0
    %792 = vmatmul.mubr.f32.gmra.mxu0 %v289
    %v793 = vpop.f32.mrf.mxu0
    %v794 = vadd.f32 %v653, %v793
    %v795 = vpop.f32.mrf.mxu0
    %796 = vdwg.mxu0
    %v797 = vld [vmem:[#allocation7] sm:$0x7]
    %v799 = vlaneseq
    %v800 = vshrl.u32 %v799, 7
    %v801 = vsub.s32 0, %v800
    %v802 = vrot.slane %v797, %v801
    %v803 = vlaneseq
    %v804 = vshrl.u32 %v803, 7
    %v805 = vsub.s32 1, %v804
    %v806 = vrot.slane %v797, %v805
    %v807 = vlaneseq
    %v808 = vshrl.u32 %v807, 7
    %v809 = vsub.s32 2, %v808
    %v810 = vrot.slane %v797, %v809
    %v814 = vadd.f32 %v723, %v802
    %v815 = vadd.f32 %v725, %v806
    %v816 = vadd.f32 %v794, %v810
    %v817 = vld [vmem:[%s8] sm:$0xff]
    %v818 = vld [vmem:[%s8 + $0x8] sm:$0xff]
    %v819 = vld [vmem:[%s8 + $0x10] sm:$0xff]
    %v820 = vld [vmem:[%s8 + $0x18] sm:$0xff]
    %v821 = vld [vmem:[%s8 + $0x20] sm:$0xff]
    %v822 = vld [vmem:[%s8 + $0x28] sm:$0xff]
    %v823 = vld [vmem:[%s8 + $0x30] sm:$0xff]
    %v824 = vld [vmem:[%s8 + $0x38] sm:$0xff]
    %v825 = vld [vmem:[%s8 + $0x40] sm:$0xff]
    %v826 = vld [vmem:[%s8 + $0x48] sm:$0xff]
    %v827 = vld [vmem:[%s8 + $0x50] sm:$0xff]
    %v828 = vld [vmem:[%s8 + $0x58] sm:$0xff]
    %v829 = vld [vmem:[%s8 + $0x60] sm:$0xff]
    %v830 = vld [vmem:[%s8 + $0x68] sm:$0xff]
    %v831 = vld [vmem:[%s8 + $0x70] sm:$0xff]
    %v832 = vld [vmem:[%s8 + $0x78] sm:$0xff]
    %v833 = vld [vmem:[%s8 + $0x80] sm:$0xff]
    %v834 = vld [vmem:[%s8 + $0x88] sm:$0xff]
    %v835 = vld [vmem:[%s8 + $0x90] sm:$0xff]
    %v836 = vld [vmem:[%s8 + $0x98] sm:$0xff]
    %v837 = vld [vmem:[%s8 + $0xa0] sm:$0xff]
    %v838 = vld [vmem:[%s8 + $0xa8] sm:$0xff]
    %v839 = vld [vmem:[%s8 + $0xb0] sm:$0xff]
    %v840 = vld [vmem:[%s8 + $0xb8] sm:$0xff]
    %v841 = vld [vmem:[%s8 + $0xc0] sm:$0xff]
    %v842 = vld [vmem:[%s8 + $0xc8] sm:$0xff]
    %v843 = vld [vmem:[%s8 + $0xd0] sm:$0xff]
    %v844 = vld [vmem:[%s8 + $0xd8] sm:$0xff]
    %v845 = vld [vmem:[%s8 + $0xe0] sm:$0xff]
    %v846 = vld [vmem:[%s8 + $0xe8] sm:$0xff]
    %v847 = vld [vmem:[%s8 + $0xf0] sm:$0xff]
    %v848 = vld [vmem:[%s8 + $0xf8] sm:$0xff]
    %v849 = vld [vmem:[%s8 + $0x100] sm:$0xff]
    %v850 = vld [vmem:[%s8 + $0x108] sm:$0xff]
    %v851 = vld [vmem:[%s8 + $0x110] sm:$0xff]
    %v852 = vld [vmem:[%s8 + $0x118] sm:$0xff]
    %v853 = vld [vmem:[%s8 + $0x120] sm:$0xff]
    %v854 = vld [vmem:[%s8 + $0x128] sm:$0xff]
    %v855 = vld [vmem:[%s8 + $0x130] sm:$0xff]
    %v856 = vld [vmem:[%s8 + $0x138] sm:$0xff]
    %v857 = vld [vmem:[%s8 + $0x140] sm:$0xff]
    %v858 = vld [vmem:[%s8 + $0x148] sm:$0xff]
    %v859 = vld [vmem:[%s8 + $0x150] sm:$0xff]
    %v860 = vld [vmem:[%s8 + $0x158] sm:$0xff]
    %v861 = vld [vmem:[%s8 + $0x160] sm:$0xff]
    %v862 = vld [vmem:[%s8 + $0x168] sm:$0xff]
    %v863 = vld [vmem:[%s8 + $0x170] sm:$0xff]
    %v864 = vld [vmem:[%s8 + $0x178] sm:$0xff]
    %v865 = vld [vmem:[#allocation9] sm:$0x7]
    %v867 = vlaneseq
    %v868 = vshrl.u32 %v867, 7
    %v869 = vsub.s32 0, %v868
    %v870 = vrot.slane %v865, %v869
    %v871 = vlaneseq
    %v872 = vshrl.u32 %v871, 7
    %v873 = vsub.s32 1, %v872
    %v874 = vrot.slane %v865, %v873
    %v875 = vlaneseq
    %v876 = vshrl.u32 %v875, 7
    %v877 = vsub.s32 2, %v876
    %v878 = vrot.slane %v865, %v877
    %882 = vmatprep.subr.mxu0 %v863
    %883 = vmatpush1.msra.mxu0 %v862
    %884 = vmatprep.subr.mxu0 %v860
    %885 = vmatpush1.msra.mxu0 %v859
    %886 = vmatprep.subr.mxu0 %v857
    %887 = vmatpush1.msra.mxu0 %v856
    %888 = vmatprep.subr.mxu0 %v854
    %889 = vmatpush1.msra.mxu0 %v853
    %890 = vmatprep.subr.mxu0 %v851
    %891 = vmatpush1.msra.mxu0 %v850
    %892 = vmatprep.subr.mxu0 %v848
    %893 = vmatpush1.msra.mxu0 %v847
    %894 = vmatprep.subr.mxu0 %v845
    %895 = vmatpush1.msra.mxu0 %v844
    %896 = vmatprep.subr.mxu0 %v842
    %897 = vmatpush1.msra.mxu0 %v841
    %898 = vmatprep.subr.mxu0 %v839
    %899 = vmatpush1.msra.mxu0 %v838
    %900 = vmatprep.subr.mxu0 %v836
    %901 = vmatpush1.msra.mxu0 %v835
    %902 = vmatprep.subr.mxu0 %v833
    %903 = vmatpush1.msra.mxu0 %v832
    %904 = vmatprep.subr.mxu0 %v830
    %905 = vmatpush1.msra.mxu0 %v829
    %906 = vmatprep.subr.mxu0 %v827
    %907 = vmatpush1.msra.mxu0 %v826
    %908 = vmatprep.subr.mxu0 %v824
    %909 = vmatpush1.msra.mxu0 %v823
    %910 = vmatprep.subr.mxu0 %v821
    %911 = vmatpush1.msra.mxu0 %v820
    %912 = vmatprep.subr.mxu0 %v818
    %913 = vmatpush1.msra.mxu0 %v817
    %914 = vmatprep.subr.mxu0 0.0
    %915 = vmatpush2.msra.mxu0 0.0
    %916 = vmatprep.subr.mxu0 0.0
    %917 = vmatpush2.msra.mxu0 0.0
    %918 = vmatprep.subr.mxu0 0.0
    %919 = vmatpush2.msra.mxu0 0.0
    %920 = vmatprep.subr.mxu0 0.0
    %921 = vmatpush2.msra.mxu0 0.0
    %922 = vmatprep.subr.mxu0 0.0
    %923 = vmatpush2.msra.mxu0 0.0
    %924 = vmatprep.subr.mxu0 0.0
    %925 = vmatpush2.msra.mxu0 0.0
    %926 = vmatprep.subr.mxu0 0.0
    %927 = vmatpush2.msra.mxu0 0.0
    %928 = vmatprep.subr.mxu0 0.0
    %929 = vmatpush2.msra.mxu0 0.0
    %930 = vmatprep.subr.mxu0 0.0
    %931 = vmatpush2.msra.mxu0 0.0
    %932 = vmatprep.subr.mxu0 0.0
    %933 = vmatpush2.msra.mxu0 0.0
    %934 = vmatprep.subr.mxu0 0.0
    %935 = vmatpush2.msra.mxu0 0.0
    %936 = vmatprep.subr.mxu0 0.0
    %937 = vmatpush2.msra.mxu0 0.0
    %938 = vmatprep.subr.mxu0 0.0
    %939 = vmatpush2.msra.mxu0 0.0
    %940 = vmatprep.subr.mxu0 0.0
    %941 = vmatpush2.msra.mxu0 0.0
    %942 = vmatprep.subr.mxu0 0.0
    %943 = vmatpush2.msra.mxu0 0.0
    %944 = vmatprep.subr.mxu0 0.0
    %945 = vmatpush2.msra.mxu0 0.0
    %946 = vmatprep.mubr.f32.mxu0 0.0
    %947 = vmatmul.mubr.f32.gmra.mxu0 0.0
    %v948 = vpop.f32.mrf.mxu0
    %v949 = vadd.f32 %v870, %v948
    %v950 = vpop.f32.mrf.mxu0
    %v951 = vadd.f32 %v874, %v950
    %952 = vdwg.mxu0
    %953 = vmatprep.subr.mxu0 0.0
    %954 = vmatpush1.msra.mxu0 %v864
    %955 = vmatprep.subr.mxu0 0.0
    %956 = vmatpush1.msra.mxu0 %v861
    %957 = vmatprep.subr.mxu0 0.0
    %958 = vmatpush1.msra.mxu0 %v858
    %959 = vmatprep.subr.mxu0 0.0
    %960 = vmatpush1.msra.mxu0 %v855
    %961 = vmatprep.subr.mxu0 0.0
    %962 = vmatpush1.msra.mxu0 %v852
    %963 = vmatprep.subr.mxu0 0.0
    %964 = vmatpush1.msra.mxu0 %v849
    %965 = vmatprep.subr.mxu0 0.0
    %966 = vmatpush1.msra.mxu0 %v846
    %967 = vmatprep.subr.mxu0 0.0
    %968 = vmatpush1.msra.mxu0 %v843
    %969 = vmatprep.subr.mxu0 0.0
    %970 = vmatpush1.msra.mxu0 %v840
    %971 = vmatprep.subr.mxu0 0.0
    %972 = vmatpush1.msra.mxu0 %v837
    %973 = vmatprep.subr.mxu0 0.0
    %974 = vmatpush1.msra.mxu0 %v834
    %975 = vmatprep.subr.mxu0 0.0
    %976 = vmatpush1.msra.mxu0 %v831
    %977 = vmatprep.subr.mxu0 0.0
    %978 = vmatpush1.msra.mxu0 %v828
    %979 = vmatprep.subr.mxu0 0.0
    %980 = vmatpush1.msra.mxu0 %v825
    %981 = vmatprep.subr.mxu0 0.0
    %982 = vmatpush1.msra.mxu0 %v822
    %983 = vmatprep.subr.mxu0 0.0
    %984 = vmatpush1.msra.mxu0 %v819
    %985 = vmatprep.subr.mxu0 0.0
    %986 = vmatpush2.msra.mxu0 0.0
    %987 = vmatprep.subr.mxu0 0.0
    %988 = vmatpush2.msra.mxu0 0.0
    %989 = vmatprep.subr.mxu0 0.0
    %990 = vmatpush2.msra.mxu0 0.0
    %991 = vmatprep.subr.mxu0 0.0
    %992 = vmatpush2.msra.mxu0 0.0
    %993 = vmatprep.subr.mxu0 0.0
    %994 = vmatpush2.msra.mxu0 0.0
    %995 = vmatprep.subr.mxu0 0.0
    %996 = vmatpush2.msra.mxu0 0.0
    %997 = vmatprep.subr.mxu0 0.0
    %998 = vmatpush2.msra.mxu0 0.0
    %999 = vmatprep.subr.mxu0 0.0
    %1000 = vmatpush2.msra.mxu0 0.0
    %1001 = vmatprep.subr.mxu0 0.0
    %1002 = vmatpush2.msra.mxu0 0.0
    %1003 = vmatprep.subr.mxu0 0.0
    %1004 = vmatpush2.msra.mxu0 0.0
    %1005 = vmatprep.subr.mxu0 0.0
    %1006 = vmatpush2.msra.mxu0 0.0
    %1007 = vmatprep.subr.mxu0 0.0
    %1008 = vmatpush2.msra.mxu0 0.0
    %1009 = vmatprep.subr.mxu0 0.0
    %1010 = vmatpush2.msra.mxu0 0.0
    %1011 = vmatprep.subr.mxu0 0.0
    %1012 = vmatpush2.msra.mxu0 0.0
    %1013 = vmatprep.subr.mxu0 0.0
    %1014 = vmatpush2.msra.mxu0 0.0
    %1015 = vmatprep.subr.mxu0 0.0
    %1016 = vmatpush2.msra.mxu0 0.0
    %1017 = vmatprep.mubr.f32.mxu0 0.0
    %1018 = vmatmul.mubr.f32.gmra.mxu0 0.0
    %v1019 = vpop.f32.mrf.mxu0
    %v1020 = vadd.f32 %v878, %v1019
    %v1021 = vpop.f32.mrf.mxu0
    %1022 = vdwg.mxu0
    %v1023 = vadd.f32 %v814, %v949
    %v1024 = vxor.u32 %v1023, 2147483648
    %v1025 = vmul.f32 %v1024, 1.442695
    %v1026 = vpow.pop %v1025
    %v1027 = vadd.f32 %v1026, 1.0
    %v1028 = vrcp.pop %v1027
    %v1029 = vmul.f32 1.0, %v1028
    %v1030 = vadd.f32 %v815, %v951
    %v1031 = vxor.u32 %v1030, 2147483648
    %v1032 = vmul.f32 %v1031, 1.442695
    %v1033 = vpow.pop %v1032
    %v1034 = vadd.f32 %v1033, 1.0
    %v1035 = vrcp.pop %v1034
    %v1036 = vmul.f32 1.0, %v1035
    %v1037 = vmul.f32 %v1029, %v1020
    %v1038 = vadd.f32 %v816, %v1037
    %v1039 = vtanh.pop %v1038
    %v1040 = vsub.f32 1.0, %v1036
    %v1041 = vmul.f32 %v1040, %v1039
    %v1042 = vmul.f32 %v1036, 0.0
    %v1043 = vadd.f32 %v1041, %v1042
    %1044 = vmatprep.subr.mxu0 %v863
    %1045 = vmatpush1.msra.mxu0 %v862
    %1046 = vmatprep.subr.mxu0 %v860
    %1047 = vmatpush1.msra.mxu0 %v859
    %1048 = vmatprep.subr.mxu0 %v857
    %1049 = vmatpush1.msra.mxu0 %v856
    %1050 = vmatprep.subr.mxu0 %v854
    %1051 = vmatpush1.msra.mxu0 %v853
    %1052 = vmatprep.subr.mxu0 %v851
    %1053 = vmatpush1.msra.mxu0 %v850
    %1054 = vmatprep.subr.mxu0 %v848
    %1055 = vmatpush1.msra.mxu0 %v847
    %1056 = vmatprep.subr.mxu0 %v845
    %1057 = vmatpush1.msra.mxu0 %v844
    %1058 = vmatprep.subr.mxu0 %v842
    %1059 = vmatpush1.msra.mxu0 %v841
    %1060 = vmatprep.subr.mxu0 %v839
    %1061 = vmatpush1.msra.mxu0 %v838
    %1062 = vmatprep.subr.mxu0 %v836
    %1063 = vmatpush1.msra.mxu0 %v835
    %1064 = vmatprep.subr.mxu0 %v833
    %1065 = vmatpush1.msra.mxu0 %v832
    %1066 = vmatprep.subr.mxu0 %v830
    %1067 = vmatpush1.msra.mxu0 %v829
    %1068 = vmatprep.subr.mxu0 %v827
    %1069 = vmatpush1.msra.mxu0 %v826
    %1070 = vmatprep.subr.mxu0 %v824
    %1071 = vmatpush1.msra.mxu0 %v823
    %1072 = vmatprep.subr.mxu0 %v821
    %1073 = vmatpush1.msra.mxu0 %v820
    %1074 = vmatprep.subr.mxu0 %v818
    %1075 = vmatpush1.msra.mxu0 %v817
    %1076 = vmatprep.subr.mxu0 0.0
    %1077 = vmatpush2.msra.mxu0 0.0
    %1078 = vmatprep.subr.mxu0 0.0
    %1079 = vmatpush2.msra.mxu0 0.0
    %1080 = vmatprep.subr.mxu0 0.0
    %1081 = vmatpush2.msra.mxu0 0.0
    %1082 = vmatprep.subr.mxu0 0.0
    %1083 = vmatpush2.msra.mxu0 0.0
    %1084 = vmatprep.subr.mxu0 0.0
    %1085 = vmatpush2.msra.mxu0 0.0
    %1086 = vmatprep.subr.mxu0 0.0
    %1087 = vmatpush2.msra.mxu0 0.0
    %1088 = vmatprep.subr.mxu0 0.0
    %1089 = vmatpush2.msra.mxu0 0.0
    %1090 = vmatprep.subr.mxu0 0.0
    %1091 = vmatpush2.msra.mxu0 0.0
    %1092 = vmatprep.subr.mxu0 0.0
    %1093 = vmatpush2.msra.mxu0 0.0
    %1094 = vmatprep.subr.mxu0 0.0
    %1095 = vmatpush2.msra.mxu0 0.0
    %1096 = vmatprep.subr.mxu0 0.0
    %1097 = vmatpush2.msra.mxu0 0.0
    %1098 = vmatprep.subr.mxu0 0.0
    %1099 = vmatpush2.msra.mxu0 0.0
    %1100 = vmatprep.subr.mxu0 0.0
    %1101 = vmatpush2.msra.mxu0 0.0
    %1102 = vmatprep.subr.mxu0 0.0
    %1103 = vmatpush2.msra.mxu0 0.0
    %1104 = vmatprep.subr.mxu0 0.0
    %1105 = vmatpush2.msra.mxu0 0.0
    %1106 = vmatprep.subr.mxu0 0.0
    %1107 = vmatpush2.msra.mxu0 0.0
    %1108 = vmatprep.mubr.f32.mxu0 0.0
    %1109 = vmatmul.mubr.f32.gmra.mxu0 %v1043
    %v1110 = vpop.f32.mrf.mxu0
    %v1111 = vadd.f32 %v870, %v1110
    %v1112 = vpop.f32.mrf.mxu0
    %v1113 = vadd.f32 %v874, %v1112
    %1114 = vdwg.mxu0
    %1115 = vmatprep.subr.mxu0 0.0
    %1116 = vmatpush1.msra.mxu0 %v864
    %1117 = vmatprep.subr.mxu0 0.0
    %1118 = vmatpush1.msra.mxu0 %v861
    %1119 = vmatprep.subr.mxu0 0.0
    %1120 = vmatpush1.msra.mxu0 %v858
    %1121 = vmatprep.subr.mxu0 0.0
    %1122 = vmatpush1.msra.mxu0 %v855
    %1123 = vmatprep.subr.mxu0 0.0
    %1124 = vmatpush1.msra.mxu0 %v852
    %1125 = vmatprep.subr.mxu0 0.0
    %1126 = vmatpush1.msra.mxu0 %v849
    %1127 = vmatprep.subr.mxu0 0.0
    %1128 = vmatpush1.msra.mxu0 %v846
    %1129 = vmatprep.subr.mxu0 0.0
    %1130 = vmatpush1.msra.mxu0 %v843
    %1131 = vmatprep.subr.mxu0 0.0
    %1132 = vmatpush1.msra.mxu0 %v840
    %1133 = vmatprep.subr.mxu0 0.0
    %1134 = vmatpush1.msra.mxu0 %v837
    %1135 = vmatprep.subr.mxu0 0.0
    %1136 = vmatpush1.msra.mxu0 %v834
    %1137 = vmatprep.subr.mxu0 0.0
    %1138 = vmatpush1.msra.mxu0 %v831
    %1139 = vmatprep.subr.mxu0 0.0
    %1140 = vmatpush1.msra.mxu0 %v828
    %1141 = vmatprep.subr.mxu0 0.0
    %1142 = vmatpush1.msra.mxu0 %v825
    %1143 = vmatprep.subr.mxu0 0.0
    %1144 = vmatpush1.msra.mxu0 %v822
    %1145 = vmatprep.subr.mxu0 0.0
    %1146 = vmatpush1.msra.mxu0 %v819
    %1147 = vmatprep.subr.mxu0 0.0
    %1148 = vmatpush2.msra.mxu0 0.0
    %1149 = vmatprep.subr.mxu0 0.0
    %1150 = vmatpush2.msra.mxu0 0.0
    %1151 = vmatprep.subr.mxu0 0.0
    %1152 = vmatpush2.msra.mxu0 0.0
    %1153 = vmatprep.subr.mxu0 0.0
    %1154 = vmatpush2.msra.mxu0 0.0
    %1155 = vmatprep.subr.mxu0 0.0
    %1156 = vmatpush2.msra.mxu0 0.0
    %1157 = vmatprep.subr.mxu0 0.0
    %1158 = vmatpush2.msra.mxu0 0.0
    %1159 = vmatprep.subr.mxu0 0.0
    %1160 = vmatpush2.msra.mxu0 0.0
    %1161 = vmatprep.subr.mxu0 0.0
    %1162 = vmatpush2.msra.mxu0 0.0
    %1163 = vmatprep.subr.mxu0 0.0
    %1164 = vmatpush2.msra.mxu0 0.0
    %1165 = vmatprep.subr.mxu0 0.0
    %1166 = vmatpush2.msra.mxu0 0.0
    %1167 = vmatprep.subr.mxu0 0.0
    %1168 = vmatpush2.msra.mxu0 0.0
    %1169 = vmatprep.subr.mxu0 0.0
    %1170 = vmatpush2.msra.mxu0 0.0
    %1171 = vmatprep.subr.mxu0 0.0
    %1172 = vmatpush2.msra.mxu0 0.0
    %1173 = vmatprep.subr.mxu0 0.0
    %1174 = vmatpush2.msra.mxu0 0.0
    %1175 = vmatprep.subr.mxu0 0.0
    %1176 = vmatpush2.msra.mxu0 0.0
    %1177 = vmatprep.subr.mxu0 0.0
    %1178 = vmatpush2.msra.mxu0 0.0
    %1179 = vmatprep.mubr.f32.mxu0 0.0
    %1180 = vmatmul.mubr.f32.gmra.mxu0 %v1043
    %v1181 = vpop.f32.mrf.mxu0
    %v1182 = vadd.f32 %v878, %v1181
    %v1183 = vpop.f32.mrf.mxu0
    %1184 = vdwg.mxu0
    %v1186 = vrot.slane %v1111, 7
    %v1188 = vadd.f32 %v814, %v1186
    %v1189 = vxor.u32 %v1188, 2147483648
    %v1190 = vmul.f32 %v1189, 1.442695
    %v1191 = vpow.pop %v1190
    %v1192 = vadd.f32 %v1191, 1.0
    %v1193 = vrcp.pop %v1192
    %v1194 = vmul.f32 1.0, %v1193
    %v1196 = vrot.slane %v1113, 7
    %v1198 = vadd.f32 %v815, %v1196
    %v1199 = vxor.u32 %v1198, 2147483648
    %v1200 = vmul.f32 %v1199, 1.442695
    %v1201 = vpow.pop %v1200
    %v1202 = vadd.f32 %v1201, 1.0
    %v1203 = vrcp.pop %v1202
    %v1204 = vmul.f32 1.0, %v1203
    %v1206 = vrot.slane %v1182, 7
    %v1208 = vmul.f32 %v1194, %v1206
    %v1209 = vadd.f32 %v816, %v1208
    %v1210 = vtanh.pop %v1209
    %v1211 = vsub.f32 1.0, %v1204
    %v1212 = vmul.f32 %v1211, %v1210
    %v1214 = vrot.slane %v1043, 7
    %v1216 = vmul.f32 %v1204, %v1214
    %v1217 = vadd.f32 %v1212, %v1216
    %vm1218 = vcmask 1040384
    %v1219 = vsel %vm1218, %v1043, %v1217
    %v1220 = vld [vmem:[#allocation10] sm:$0xff]
    %v1221 = vld [vmem:[#allocation10 + $0x8] sm:$0xff]
    %v1222 = vld [vmem:[#allocation10 + $0x10] sm:$0xff]
    %v1223 = vld [vmem:[#allocation10 + $0x18] sm:$0xff]
    %v1224 = vld [vmem:[#allocation10 + $0x20] sm:$0xff]
    %v1225 = vld [vmem:[#allocation10 + $0x28] sm:$0xff]
    %v1226 = vld [vmem:[#allocation10 + $0x30] sm:$0xff]
    %v1227 = vld [vmem:[#allocation10 + $0x38] sm:$0xff]
    %v1228 = vld [vmem:[#allocation10 + $0x40] sm:$0xff]
    %v1229 = vld [vmem:[#allocation10 + $0x48] sm:$0xff]
    %v1230 = vld [vmem:[#allocation10 + $0x50] sm:$0xff]
    %v1231 = vld [vmem:[#allocation10 + $0x58] sm:$0xff]
    %v1232 = vld [vmem:[#allocation10 + $0x60] sm:$0xff]
    %v1233 = vld [vmem:[#allocation10 + $0x68] sm:$0xff]
    %v1234 = vld [vmem:[#allocation10 + $0x70] sm:$0xff]
    %v1235 = vld [vmem:[#allocation10 + $0x78] sm:$0xff]
    %v1236 = vld [vmem:[#allocation12] sm:$0x1]
    %v1238 = vlaneseq
    %v1239 = vshrl.u32 %v1238, 7
    %v1240 = vsub.s32 0, %v1239
    %v1241 = vrot.slane %v1236, %v1240
    %1243 = vmatprep.subr.mxu0 0.0
    %1244 = vmatpush1.msra.mxu0 %v1235
    %1245 = vmatprep.subr.mxu0 0.0
    %1246 = vmatpush1.msra.mxu0 %v1234
    %1247 = vmatprep.subr.mxu0 0.0
    %1248 = vmatpush1.msra.mxu0 %v1233
    %1249 = vmatprep.subr.mxu0 0.0
    %1250 = vmatpush1.msra.mxu0 %v1232
    %1251 = vmatprep.subr.mxu0 0.0
    %1252 = vmatpush1.msra.mxu0 %v1231
    %1253 = vmatprep.subr.mxu0 0.0
    %1254 = vmatpush1.msra.mxu0 %v1230
    %1255 = vmatprep.subr.mxu0 0.0
    %1256 = vmatpush1.msra.mxu0 %v1229
    %1257 = vmatprep.subr.mxu0 0.0
    %1258 = vmatpush1.msra.mxu0 %v1228
    %1259 = vmatprep.subr.mxu0 0.0
    %1260 = vmatpush1.msra.mxu0 %v1227
    %1261 = vmatprep.subr.mxu0 0.0
    %1262 = vmatpush1.msra.mxu0 %v1226
    %1263 = vmatprep.subr.mxu0 0.0
    %1264 = vmatpush1.msra.mxu0 %v1225
    %1265 = vmatprep.subr.mxu0 0.0
    %1266 = vmatpush1.msra.mxu0 %v1224
    %1267 = vmatprep.subr.mxu0 0.0
    %1268 = vmatpush1.msra.mxu0 %v1223
    %1269 = vmatprep.subr.mxu0 0.0
    %1270 = vmatpush1.msra.mxu0 %v1222
    %1271 = vmatprep.subr.mxu0 0.0
    %1272 = vmatpush1.msra.mxu0 %v1221
    %1273 = vmatprep.subr.mxu0 0.0
    %1274 = vmatpush1.msra.mxu0 %v1220
    %1275 = vmatprep.subr.mxu0 0.0
    %1276 = vmatpush2.msra.mxu0 0.0
    %1277 = vmatprep.subr.mxu0 0.0
    %1278 = vmatpush2.msra.mxu0 0.0
    %1279 = vmatprep.subr.mxu0 0.0
    %1280 = vmatpush2.msra.mxu0 0.0
    %1281 = vmatprep.subr.mxu0 0.0
    %1282 = vmatpush2.msra.mxu0 0.0
    %1283 = vmatprep.subr.mxu0 0.0
    %1284 = vmatpush2.msra.mxu0 0.0
    %1285 = vmatprep.subr.mxu0 0.0
    %1286 = vmatpush2.msra.mxu0 0.0
    %1287 = vmatprep.subr.mxu0 0.0
    %1288 = vmatpush2.msra.mxu0 0.0
    %1289 = vmatprep.subr.mxu0 0.0
    %1290 = vmatpush2.msra.mxu0 0.0
    %1291 = vmatprep.subr.mxu0 0.0
    %1292 = vmatpush2.msra.mxu0 0.0
    %1293 = vmatprep.subr.mxu0 0.0
    %1294 = vmatpush2.msra.mxu0 0.0
    %1295 = vmatprep.subr.mxu0 0.0
    %1296 = vmatpush2.msra.mxu0 0.0
    %1297 = vmatprep.subr.mxu0 0.0
    %1298 = vmatpush2.msra.mxu0 0.0
    %1299 = vmatprep.subr.mxu0 0.0
    %1300 = vmatpush2.msra.mxu0 0.0
    %1301 = vmatprep.subr.mxu0 0.0
    %1302 = vmatpush2.msra.mxu0 0.0
    %1303 = vmatprep.subr.mxu0 0.0
    %1304 = vmatpush2.msra.mxu0 0.0
    %1305 = vmatprep.subr.mxu0 0.0
    %1306 = vmatpush2.msra.mxu0 0.0
    %1307 = vmatprep.mubr.f32.mxu0 0.0
    %1308 = vmatmul.mubr.f32.gmra.mxu0 %v1219
    %v1309 = vpop.f32.mrf.mxu0
    %v1310 = vadd.f32 %v1241, %v1309
    %v1311 = vpop.f32.mrf.mxu0
    %1312 = vdwg.mxu0
    %v1313 = vmax.f32 %v1310, 0.0
    %v1314 = vld [vmem:[#allocation13] sm:$0xff]
    %v1315 = vld [vmem:[#allocation13 + $0x8] sm:$0xff]
    %v1316 = vld [vmem:[#allocation13 + $0x10] sm:$0xff]
    %v1317 = vld [vmem:[#allocation13 + $0x18] sm:$0xff]
    %v1318 = vld [vmem:[#allocation13 + $0x20] sm:$0xff]
    %v1319 = vld [vmem:[#allocation13 + $0x28] sm:$0xff]
    %v1320 = vld [vmem:[#allocation13 + $0x30] sm:$0xff]
    %v1321 = vld [vmem:[#allocation13 + $0x38] sm:$0xff]
    %v1322 = vld [vmem:[#allocation13 + $0x40] sm:$0xff]
    %v1323 = vld [vmem:[#allocation13 + $0x48] sm:$0xff]
    %v1324 = vld [vmem:[#allocation13 + $0x50] sm:$0xff]
    %v1325 = vld [vmem:[#allocation13 + $0x58] sm:$0xff]
    %v1326 = vld [vmem:[#allocation13 + $0x60] sm:$0xff]
    %v1327 = vld [vmem:[#allocation13 + $0x68] sm:$0xff]
    %v1328 = vld [vmem:[#allocation13 + $0x70] sm:$0xff]
    %v1329 = vld [vmem:[#allocation13 + $0x78] sm:$0xff]
    %v1330 = vld [vmem:[#allocation15] sm:$0x1]
    %v1332 = vlaneseq
    %v1333 = vshrl.u32 %v1332, 7
    %v1334 = vsub.s32 0, %v1333
    %v1335 = vrot.slane %v1330, %v1334
    %1337 = vmatprep.subr.mxu0 0.0
    %1338 = vmatpush1.msra.mxu0 %v1329
    %1339 = vmatprep.subr.mxu0 0.0
    %1340 = vmatpush1.msra.mxu0 %v1328
    %1341 = vmatprep.subr.mxu0 0.0
    %1342 = vmatpush1.msra.mxu0 %v1327
    %1343 = vmatprep.subr.mxu0 0.0
    %1344 = vmatpush1.msra.mxu0 %v1326
    %1345 = vmatprep.subr.mxu0 0.0
    %1346 = vmatpush1.msra.mxu0 %v1325
    %1347 = vmatprep.subr.mxu0 0.0
    %1348 = vmatpush1.msra.mxu0 %v1324
    %1349 = vmatprep.subr.mxu0 0.0
    %1350 = vmatpush1.msra.mxu0 %v1323
    %1351 = vmatprep.subr.mxu0 0.0
    %1352 = vmatpush1.msra.mxu0 %v1322
    %1353 = vmatprep.subr.mxu0 0.0
    %1354 = vmatpush1.msra.mxu0 %v1321
    %1355 = vmatprep.subr.mxu0 0.0
    %1356 = vmatpush1.msra.mxu0 %v1320
    %1357 = vmatprep.subr.mxu0 0.0
    %1358 = vmatpush1.msra.mxu0 %v1319
    %1359 = vmatprep.subr.mxu0 0.0
    %1360 = vmatpush1.msra.mxu0 %v1318
    %1361 = vmatprep.subr.mxu0 0.0
    %1362 = vmatpush1.msra.mxu0 %v1317
    %1363 = vmatprep.subr.mxu0 0.0
    %1364 = vmatpush1.msra.mxu0 %v1316
    %1365 = vmatprep.subr.mxu0 0.0
    %1366 = vmatpush1.msra.mxu0 %v1315
    %1367 = vmatprep.subr.mxu0 0.0
    %1368 = vmatpush1.msra.mxu0 %v1314
    %1369 = vmatprep.subr.mxu0 0.0
    %1370 = vmatpush2.msra.mxu0 0.0
    %1371 = vmatprep.subr.mxu0 0.0
    %1372 = vmatpush2.msra.mxu0 0.0
    %1373 = vmatprep.subr.mxu0 0.0
    %1374 = vmatpush2.msra.mxu0 0.0
    %1375 = vmatprep.subr.mxu0 0.0
    %1376 = vmatpush2.msra.mxu0 0.0
    %1377 = vmatprep.subr.mxu0 0.0
    %1378 = vmatpush2.msra.mxu0 0.0
    %1379 = vmatprep.subr.mxu0 0.0
    %1380 = vmatpush2.msra.mxu0 0.0
    %1381 = vmatprep.subr.mxu0 0.0
    %1382 = vmatpush2.msra.mxu0 0.0
    %1383 = vmatprep.subr.mxu0 0.0
    %1384 = vmatpush2.msra.mxu0 0.0
    %1385 = vmatprep.subr.mxu0 0.0
    %1386 = vmatpush2.msra.mxu0 0.0
    %1387 = vmatprep.subr.mxu0 0.0
    %1388 = vmatpush2.msra.mxu0 0.0
    %1389 = vmatprep.subr.mxu0 0.0
    %1390 = vmatpush2.msra.mxu0 0.0
    %1391 = vmatprep.subr.mxu0 0.0
    %1392 = vmatpush2.msra.mxu0 0.0
    %1393 = vmatprep.subr.mxu0 0.0
    %1394 = vmatpush2.msra.mxu0 0.0
    %1395 = vmatprep.subr.mxu0 0.0
    %1396 = vmatpush2.msra.mxu0 0.0
    %1397 = vmatprep.subr.mxu0 0.0
    %1398 = vmatpush2.msra.mxu0 0.0
    %1399 = vmatprep.subr.mxu0 0.0
    %1400 = vmatpush2.msra.mxu0 0.0
    %1401 = vmatprep.mubr.f32.mxu0 0.0
    %1402 = vmatmul.mubr.f32.gmra.mxu0 %v1313
    %v1403 = vpop.f32.mrf.mxu0
    %v1404 = vadd.f32 %v1335, %v1403
    %v1405 = vpop.f32.mrf.mxu0
    %1406 = vdwg.mxu0
    %v1407 = vld [vmem:[#allocation16] sm:$0xff]
    %v1408 = vld [vmem:[#allocation16 + $0x8] sm:$0xff]
    %v1409 = vld [vmem:[#allocation16 + $0x10] sm:$0xff]
    %v1410 = vld [vmem:[#allocation16 + $0x18] sm:$0xff]
    %v1411 = vld [vmem:[#allocation16 + $0x20] sm:$0xff]
    %v1412 = vld [vmem:[#allocation16 + $0x28] sm:$0xff]
    %v1413 = vld [vmem:[#allocation16 + $0x30] sm:$0xff]
    %v1414 = vld [vmem:[#allocation16 + $0x38] sm:$0xff]
    %v1415 = vld [vmem:[#allocation16 + $0x40] sm:$0xff]
    %v1416 = vld [vmem:[#allocation16 + $0x48] sm:$0xff]
    %v1417 = vld [vmem:[#allocation16 + $0x50] sm:$0xff]
    %v1418 = vld [vmem:[#allocation16 + $0x58] sm:$0xff]
    %v1419 = vld [vmem:[#allocation16 + $0x60] sm:$0xff]
    %v1420 = vld [vmem:[#allocation16 + $0x68] sm:$0xff]
    %v1421 = vld [vmem:[#allocation16 + $0x70] sm:$0xff]
    %v1422 = vld [vmem:[#allocation16 + $0x78] sm:$0xff]
    %1423 = vmatprep.subr.mxu0 0.0
    %1424 = vmatpush1.msra.mxu0 %v1422
    %1425 = vmatprep.subr.mxu0 0.0
    %1426 = vmatpush1.msra.mxu0 %v1421
    %1427 = vmatprep.subr.mxu0 0.0
    %1428 = vmatpush1.msra.mxu0 %v1420
    %1429 = vmatprep.subr.mxu0 0.0
    %1430 = vmatpush1.msra.mxu0 %v1419
    %1431 = vmatprep.subr.mxu0 0.0
    %1432 = vmatpush1.msra.mxu0 %v1418
    %1433 = vmatprep.subr.mxu0 0.0
    %1434 = vmatpush1.msra.mxu0 %v1417
    %1435 = vmatprep.subr.mxu0 0.0
    %1436 = vmatpush1.msra.mxu0 %v1416
    %1437 = vmatprep.subr.mxu0 0.0
    %1438 = vmatpush1.msra.mxu0 %v1415
    %1439 = vmatprep.subr.mxu0 0.0
    %1440 = vmatpush1.msra.mxu0 %v1414
    %1441 = vmatprep.subr.mxu0 0.0
    %1442 = vmatpush1.msra.mxu0 %v1413
    %1443 = vmatprep.subr.mxu0 0.0
    %1444 = vmatpush1.msra.mxu0 %v1412
    %1445 = vmatprep.subr.mxu0 0.0
    %1446 = vmatpush1.msra.mxu0 %v1411
    %1447 = vmatprep.subr.mxu0 0.0
    %1448 = vmatpush1.msra.mxu0 %v1410
    %1449 = vmatprep.subr.mxu0 0.0
    %1450 = vmatpush1.msra.mxu0 %v1409
    %1451 = vmatprep.subr.mxu0 0.0
    %1452 = vmatpush1.msra.mxu0 %v1408
    %1453 = vmatprep.subr.mxu0 0.0
    %1454 = vmatpush1.msra.mxu0 %v1407
    %1455 = vmatprep.subr.mxu0 0.0
    %1456 = vmatpush2.msra.mxu0 0.0
    %1457 = vmatprep.subr.mxu0 0.0
    %1458 = vmatpush2.msra.mxu0 0.0
    %1459 = vmatprep.subr.mxu0 0.0
    %1460 = vmatpush2.msra.mxu0 0.0
    %1461 = vmatprep.subr.mxu0 0.0
    %1462 = vmatpush2.msra.mxu0 0.0
    %1463 = vmatprep.subr.mxu0 0.0
    %1464 = vmatpush2.msra.mxu0 0.0
    %1465 = vmatprep.subr.mxu0 0.0
    %1466 = vmatpush2.msra.mxu0 0.0
    %1467 = vmatprep.subr.mxu0 0.0
    %1468 = vmatpush2.msra.mxu0 0.0
    %1469 = vmatprep.subr.mxu0 0.0
    %1470 = vmatpush2.msra.mxu0 0.0
    %1471 = vmatprep.subr.mxu0 0.0
    %1472 = vmatpush2.msra.mxu0 0.0
    %1473 = vmatprep.subr.mxu0 0.0
    %1474 = vmatpush2.msra.mxu0 0.0
    %1475 = vmatprep.subr.mxu0 0.0
    %1476 = vmatpush2.msra.mxu0 0.0
    %1477 = vmatprep.subr.mxu0 0.0
    %1478 = vmatpush2.msra.mxu0 0.0
    %1479 = vmatprep.subr.mxu0 0.0
    %1480 = vmatpush2.msra.mxu0 0.0
    %1481 = vmatprep.subr.mxu0 0.0
    %1482 = vmatpush2.msra.mxu0 0.0
    %1483 = vmatprep.subr.mxu0 0.0
    %1484 = vmatpush2.msra.mxu0 0.0
    %1485 = vmatprep.subr.mxu0 0.0
    %1486 = vmatpush2.msra.mxu0 0.0
    %1487 = vmatprep.mubr.f32.mxu0 0.0
    %1488 = vmatmul.mubr.f32.gmra.mxu0 %v1219
    %v1489 = vpop.f32.mrf.mxu0
    %v1490 = vadd.f32 0.0, %v1489
    %v1491 = vpop.f32.mrf.mxu0
    %1492 = vdwg.mxu0
    %v1493 = vadd.f32 %v1404, %v1490
    %v1494 = vld [vmem:[#allocation18] sm:$0x1]
    %v1496 = vlaneseq
    %v1497 = vshrl.u32 %v1496, 7
    %v1498 = vsub.s32 0, %v1497
    %v1499 = vrot.slane %v1494, %v1498
    %v1501 = vadd.f32 %v1493, %v1499
    %v1502 = vld [vmem:[%s16] sm:$0xff]
    %v1503 = vld [vmem:[%s16 + $0x8] sm:$0xff]
    %v1504 = vld [vmem:[%s16 + $0x10] sm:$0xff]
    %v1505 = vld [vmem:[%s16 + $0x18] sm:$0xff]
    %v1506 = vld [vmem:[%s16 + $0x20] sm:$0xff]
    %v1507 = vld [vmem:[%s16 + $0x28] sm:$0xff]
    %v1508 = vld [vmem:[%s16 + $0x30] sm:$0xff]
    %v1509 = vld [vmem:[%s16 + $0x38] sm:$0xff]
    %v1510 = vld [vmem:[%s16 + $0x40] sm:$0xff]
    %v1511 = vld [vmem:[%s16 + $0x48] sm:$0xff]
    %v1512 = vld [vmem:[%s16 + $0x50] sm:$0xff]
    %v1513 = vld [vmem:[%s16 + $0x58] sm:$0xff]
    %v1514 = vld [vmem:[%s16 + $0x60] sm:$0xff]
    %v1515 = vld [vmem:[%s16 + $0x68] sm:$0xff]
    %v1516 = vld [vmem:[%s16 + $0x70] sm:$0xff]
    %v1517 = vld [vmem:[%s16 + $0x78] sm:$0xff]
    %v1518 = vld [vmem:[%s16 + $0x80] sm:$0xff]
    %v1519 = vld [vmem:[%s16 + $0x88] sm:$0xff]
    %v1520 = vld [vmem:[%s16 + $0x90] sm:$0xff]
    %v1521 = vld [vmem:[%s16 + $0x98] sm:$0xff]
    %v1522 = vld [vmem:[%s16 + $0xa0] sm:$0xff]
    %v1523 = vld [vmem:[%s16 + $0xa8] sm:$0xff]
    %v1524 = vld [vmem:[%s16 + $0xb0] sm:$0xff]
    %v1525 = vld [vmem:[%s16 + $0xb8] sm:$0xff]
    %v1526 = vld [vmem:[%s16 + $0xc0] sm:$0xff]
    %v1527 = vld [vmem:[%s16 + $0xc8] sm:$0xff]
    %v1528 = vld [vmem:[%s16 + $0xd0] sm:$0xff]
    %v1529 = vld [vmem:[%s16 + $0xd8] sm:$0xff]
    %v1530 = vld [vmem:[%s16 + $0xe0] sm:$0xff]
    %v1531 = vld [vmem:[%s16 + $0xe8] sm:$0xff]
    %v1532 = vld [vmem:[%s16 + $0xf0] sm:$0xff]
    %v1533 = vld [vmem:[%s16 + $0xf8] sm:$0xff]
    %v1534 = vld [vmem:[#allocation19] sm:$0x3]
    %v1536 = vlaneseq
    %v1537 = vshrl.u32 %v1536, 7
    %v1538 = vsub.s32 0, %v1537
    %v1539 = vrot.slane %v1534, %v1538
    %v1540 = vlaneseq
    %v1541 = vshrl.u32 %v1540, 7
    %v1542 = vsub.s32 1, %v1541
    %v1543 = vrot.slane %v1534, %v1542
    %1546 = vmatprep.subr.mxu0 %v1533
    %1547 = vmatpush1.msra.mxu0 %v1532
    %1548 = vmatprep.subr.mxu0 %v1531
    %1549 = vmatpush1.msra.mxu0 %v1530
    %1550 = vmatprep.subr.mxu0 %v1529
    %1551 = vmatpush1.msra.mxu0 %v1528
    %1552 = vmatprep.subr.mxu0 %v1527
    %1553 = vmatpush1.msra.mxu0 %v1526
    %1554 = vmatprep.subr.mxu0 %v1525
    %1555 = vmatpush1.msra.mxu0 %v1524
    %1556 = vmatprep.subr.mxu0 %v1523
    %1557 = vmatpush1.msra.mxu0 %v1522
    %1558 = vmatprep.subr.mxu0 %v1521
    %1559 = vmatpush1.msra.mxu0 %v1520
    %1560 = vmatprep.subr.mxu0 %v1519
    %1561 = vmatpush1.msra.mxu0 %v1518
    %1562 = vmatprep.subr.mxu0 %v1517
    %1563 = vmatpush1.msra.mxu0 %v1516
    %1564 = vmatprep.subr.mxu0 %v1515
    %1565 = vmatpush1.msra.mxu0 %v1514
    %1566 = vmatprep.subr.mxu0 %v1513
    %1567 = vmatpush1.msra.mxu0 %v1512
    %1568 = vmatprep.subr.mxu0 %v1511
    %1569 = vmatpush1.msra.mxu0 %v1510
    %1570 = vmatprep.subr.mxu0 %v1509
    %1571 = vmatpush1.msra.mxu0 %v1508
    %1572 = vmatprep.subr.mxu0 %v1507
    %1573 = vmatpush1.msra.mxu0 %v1506
    %1574 = vmatprep.subr.mxu0 %v1505
    %1575 = vmatpush1.msra.mxu0 %v1504
    %1576 = vmatprep.subr.mxu0 %v1503
    %1577 = vmatpush1.msra.mxu0 %v1502
    %1578 = vmatprep.subr.mxu0 0.0
    %1579 = vmatpush2.msra.mxu0 0.0
    %1580 = vmatprep.subr.mxu0 0.0
    %1581 = vmatpush2.msra.mxu0 0.0
    %1582 = vmatprep.subr.mxu0 0.0
    %1583 = vmatpush2.msra.mxu0 0.0
    %1584 = vmatprep.subr.mxu0 0.0
    %1585 = vmatpush2.msra.mxu0 0.0
    %1586 = vmatprep.subr.mxu0 0.0
    %1587 = vmatpush2.msra.mxu0 0.0
    %1588 = vmatprep.subr.mxu0 0.0
    %1589 = vmatpush2.msra.mxu0 0.0
    %1590 = vmatprep.subr.mxu0 0.0
    %1591 = vmatpush2.msra.mxu0 0.0
    %1592 = vmatprep.subr.mxu0 0.0
    %1593 = vmatpush2.msra.mxu0 0.0
    %1594 = vmatprep.subr.mxu0 0.0
    %1595 = vmatpush2.msra.mxu0 0.0
    %1596 = vmatprep.subr.mxu0 0.0
    %1597 = vmatpush2.msra.mxu0 0.0
    %1598 = vmatprep.subr.mxu0 0.0
    %1599 = vmatpush2.msra.mxu0 0.0
    %1600 = vmatprep.subr.mxu0 0.0
    %1601 = vmatpush2.msra.mxu0 0.0
    %1602 = vmatprep.subr.mxu0 0.0
    %1603 = vmatpush2.msra.mxu0 0.0
    %1604 = vmatprep.subr.mxu0 0.0
    %1605 = vmatpush2.msra.mxu0 0.0
    %1606 = vmatprep.subr.mxu0 0.0
    %1607 = vmatpush2.msra.mxu0 0.0
    %1608 = vmatprep.subr.mxu0 0.0
    %1609 = vmatpush2.msra.mxu0 0.0
    %1610 = vmatprep.mubr.f32.mxu0 0.0
    %1611 = vmatmul.mubr.f32.gmra.mxu0 %v1501
    %v1612 = vpop.f32.mrf.mxu0
    %v1613 = vadd.f32 %v1539, %v1612
    %v1614 = vpop.f32.mrf.mxu0
    %v1615 = vadd.f32 %v1543, %v1614
    %1616 = vdwg.mxu0
    %v1617 = vmax.f32 %v1613, 0.0
    %v1618 = vmax.f32 %v1615, 0.0
    %v1619 = vld [vmem:[%s18] sm:$0xff]
    %v1620 = vld [vmem:[%s18 + $0x8] sm:$0xff]
    %v1621 = vld [vmem:[%s18 + $0x10] sm:$0xff]
    %v1622 = vld [vmem:[%s18 + $0x18] sm:$0xff]
    %v1623 = vld [vmem:[%s18 + $0x20] sm:$0xff]
    %v1624 = vld [vmem:[%s18 + $0x28] sm:$0xff]
    %v1625 = vld [vmem:[%s18 + $0x30] sm:$0xff]
    %v1626 = vld [vmem:[%s18 + $0x38] sm:$0xff]
    %v1627 = vld [vmem:[%s18 + $0x40] sm:$0xff]
    %v1628 = vld [vmem:[%s18 + $0x48] sm:$0xff]
    %v1629 = vld [vmem:[%s18 + $0x50] sm:$0xff]
    %v1630 = vld [vmem:[%s18 + $0x58] sm:$0xff]
    %v1631 = vld [vmem:[%s18 + $0x60] sm:$0xff]
    %v1632 = vld [vmem:[%s18 + $0x68] sm:$0xff]
    %v1633 = vld [vmem:[%s18 + $0x70] sm:$0xff]
    %v1634 = vld [vmem:[%s18 + $0x78] sm:$0xff]
    %v1635 = vld [vmem:[%s18 + $0x80] sm:$0xff]
    %v1636 = vld [vmem:[%s18 + $0x88] sm:$0xff]
    %v1637 = vld [vmem:[%s18 + $0x90] sm:$0xff]
    %v1638 = vld [vmem:[%s18 + $0x98] sm:$0xff]
    %v1639 = vld [vmem:[%s18 + $0xa0] sm:$0xff]
    %v1640 = vld [vmem:[%s18 + $0xa8] sm:$0xff]
    %v1641 = vld [vmem:[%s18 + $0xb0] sm:$0xff]
    %v1642 = vld [vmem:[%s18 + $0xb8] sm:$0xff]
    %v1643 = vld [vmem:[%s18 + $0xc0] sm:$0xff]
    %v1644 = vld [vmem:[%s18 + $0xc8] sm:$0xff]
    %v1645 = vld [vmem:[%s18 + $0xd0] sm:$0xff]
    %v1646 = vld [vmem:[%s18 + $0xd8] sm:$0xff]
    %v1647 = vld [vmem:[%s18 + $0xe0] sm:$0xff]
    %v1648 = vld [vmem:[%s18 + $0xe8] sm:$0xff]
    %v1649 = vld [vmem:[%s18 + $0xf0] sm:$0xff]
    %v1650 = vld [vmem:[%s18 + $0xf8] sm:$0xff]
    %v1651 = vld [vmem:[#allocation21] sm:$0x1]
    %v1653 = vlaneseq
    %v1654 = vshrl.u32 %v1653, 7
    %v1655 = vsub.s32 0, %v1654
    %v1656 = vrot.slane %v1651, %v1655
    %1658 = vmatprep.subr.mxu0 0.0
    %1659 = vmatpush1.msra.mxu0 %v1634
    %1660 = vmatprep.subr.mxu0 0.0
    %1661 = vmatpush1.msra.mxu0 %v1633
    %1662 = vmatprep.subr.mxu0 0.0
    %1663 = vmatpush1.msra.mxu0 %v1632
    %1664 = vmatprep.subr.mxu0 0.0
    %1665 = vmatpush1.msra.mxu0 %v1631
    %1666 = vmatprep.subr.mxu0 0.0
    %1667 = vmatpush1.msra.mxu0 %v1630
    %1668 = vmatprep.subr.mxu0 0.0
    %1669 = vmatpush1.msra.mxu0 %v1629
    %1670 = vmatprep.subr.mxu0 0.0
    %1671 = vmatpush1.msra.mxu0 %v1628
    %1672 = vmatprep.subr.mxu0 0.0
    %1673 = vmatpush1.msra.mxu0 %v1627
    %1674 = vmatprep.subr.mxu0 0.0
    %1675 = vmatpush1.msra.mxu0 %v1626
    %1676 = vmatprep.subr.mxu0 0.0
    %1677 = vmatpush1.msra.mxu0 %v1625
    %1678 = vmatprep.subr.mxu0 0.0
    %1679 = vmatpush1.msra.mxu0 %v1624
    %1680 = vmatprep.subr.mxu0 0.0
    %1681 = vmatpush1.msra.mxu0 %v1623
    %1682 = vmatprep.subr.mxu0 0.0
    %1683 = vmatpush1.msra.mxu0 %v1622
    %1684 = vmatprep.subr.mxu0 0.0
    %1685 = vmatpush1.msra.mxu0 %v1621
    %1686 = vmatprep.subr.mxu0 0.0
    %1687 = vmatpush1.msra.mxu0 %v1620
    %1688 = vmatprep.subr.mxu0 0.0
    %1689 = vmatpush1.msra.mxu0 %v1619
    %1690 = vmatprep.subr.mxu0 0.0
    %1691 = vmatpush2.msra.mxu0 %v1650
    %1692 = vmatprep.subr.mxu0 0.0
    %1693 = vmatpush2.msra.mxu0 %v1649
    %1694 = vmatprep.subr.mxu0 0.0
    %1695 = vmatpush2.msra.mxu0 %v1648
    %1696 = vmatprep.subr.mxu0 0.0
    %1697 = vmatpush2.msra.mxu0 %v1647
    %1698 = vmatprep.subr.mxu0 0.0
    %1699 = vmatpush2.msra.mxu0 %v1646
    %1700 = vmatprep.subr.mxu0 0.0
    %1701 = vmatpush2.msra.mxu0 %v1645
    %1702 = vmatprep.subr.mxu0 0.0
    %1703 = vmatpush2.msra.mxu0 %v1644
    %1704 = vmatprep.subr.mxu0 0.0
    %1705 = vmatpush2.msra.mxu0 %v1643
    %1706 = vmatprep.subr.mxu0 0.0
    %1707 = vmatpush2.msra.mxu0 %v1642
    %1708 = vmatprep.subr.mxu0 0.0
    %1709 = vmatpush2.msra.mxu0 %v1641
    %1710 = vmatprep.subr.mxu0 0.0
    %1711 = vmatpush2.msra.mxu0 %v1640
    %1712 = vmatprep.subr.mxu0 0.0
    %1713 = vmatpush2.msra.mxu0 %v1639
    %1714 = vmatprep.subr.mxu0 0.0
    %1715 = vmatpush2.msra.mxu0 %v1638
    %1716 = vmatprep.subr.mxu0 0.0
    %1717 = vmatpush2.msra.mxu0 %v1637
    %1718 = vmatprep.subr.mxu0 0.0
    %1719 = vmatpush2.msra.mxu0 %v1636
    %1720 = vmatprep.subr.mxu0 0.0
    %1721 = vmatpush2.msra.mxu0 %v1635
    %1722 = vmatprep.mubr.f32.mxu0 %v1618
    %1723 = vmatmul.mubr.f32.gmra.mxu0 %v1617
    %v1724 = vpop.f32.mrf.mxu0
    %v1725 = vadd.f32 %v1656, %v1724
    %v1726 = vpop.f32.mrf.mxu0
    %1727 = vdwg.mxu0
    %v1728 = vld [vmem:[%s20] sm:$0xff]
    %v1729 = vld [vmem:[%s20 + $0x8] sm:$0xff]
    %v1730 = vld [vmem:[%s20 + $0x10] sm:$0xff]
    %v1731 = vld [vmem:[%s20 + $0x18] sm:$0xff]
    %v1732 = vld [vmem:[%s20 + $0x20] sm:$0xff]
    %v1733 = vld [vmem:[%s20 + $0x28] sm:$0xff]
    %v1734 = vld [vmem:[%s20 + $0x30] sm:$0xff]
    %v1735 = vld [vmem:[%s20 + $0x38] sm:$0xff]
    %v1736 = vld [vmem:[%s20 + $0x40] sm:$0xff]
    %v1737 = vld [vmem:[%s20 + $0x48] sm:$0xff]
    %v1738 = vld [vmem:[%s20 + $0x50] sm:$0xff]
    %v1739 = vld [vmem:[%s20 + $0x58] sm:$0xff]
    %v1740 = vld [vmem:[%s20 + $0x60] sm:$0xff]
    %v1741 = vld [vmem:[%s20 + $0x68] sm:$0xff]
    %v1742 = vld [vmem:[%s20 + $0x70] sm:$0xff]
    %v1743 = vld [vmem:[%s20 + $0x78] sm:$0xff]
    %1744 = vmatprep.subr.mxu0 0.0
    %1745 = vmatpush1.msra.mxu0 %v1743
    %1746 = vmatprep.subr.mxu0 0.0
    %1747 = vmatpush1.msra.mxu0 %v1742
    %1748 = vmatprep.subr.mxu0 0.0
    %1749 = vmatpush1.msra.mxu0 %v1741
    %1750 = vmatprep.subr.mxu0 0.0
    %1751 = vmatpush1.msra.mxu0 %v1740
    %1752 = vmatprep.subr.mxu0 0.0
    %1753 = vmatpush1.msra.mxu0 %v1739
    %1754 = vmatprep.subr.mxu0 0.0
    %1755 = vmatpush1.msra.mxu0 %v1738
    %1756 = vmatprep.subr.mxu0 0.0
    %1757 = vmatpush1.msra.mxu0 %v1737
    %1758 = vmatprep.subr.mxu0 0.0
    %1759 = vmatpush1.msra.mxu0 %v1736
    %1760 = vmatprep.subr.mxu0 0.0
    %1761 = vmatpush1.msra.mxu0 %v1735
    %1762 = vmatprep.subr.mxu0 0.0
    %1763 = vmatpush1.msra.mxu0 %v1734
    %1764 = vmatprep.subr.mxu0 0.0
    %1765 = vmatpush1.msra.mxu0 %v1733
    %1766 = vmatprep.subr.mxu0 0.0
    %1767 = vmatpush1.msra.mxu0 %v1732
    %1768 = vmatprep.subr.mxu0 0.0
    %1769 = vmatpush1.msra.mxu0 %v1731
    %1770 = vmatprep.subr.mxu0 0.0
    %1771 = vmatpush1.msra.mxu0 %v1730
    %1772 = vmatprep.subr.mxu0 0.0
    %1773 = vmatpush1.msra.mxu0 %v1729
    %1774 = vmatprep.subr.mxu0 0.0
    %1775 = vmatpush1.msra.mxu0 %v1728
    %1776 = vmatprep.subr.mxu0 0.0
    %1777 = vmatpush2.msra.mxu0 0.0
    %1778 = vmatprep.subr.mxu0 0.0
    %1779 = vmatpush2.msra.mxu0 0.0
    %1780 = vmatprep.subr.mxu0 0.0
    %1781 = vmatpush2.msra.mxu0 0.0
    %1782 = vmatprep.subr.mxu0 0.0
    %1783 = vmatpush2.msra.mxu0 0.0
    %1784 = vmatprep.subr.mxu0 0.0
    %1785 = vmatpush2.msra.mxu0 0.0
    %1786 = vmatprep.subr.mxu0 0.0
    %1787 = vmatpush2.msra.mxu0 0.0
    %1788 = vmatprep.subr.mxu0 0.0
    %1789 = vmatpush2.msra.mxu0 0.0
    %1790 = vmatprep.subr.mxu0 0.0
    %1791 = vmatpush2.msra.mxu0 0.0
    %1792 = vmatprep.subr.mxu0 0.0
    %1793 = vmatpush2.msra.mxu0 0.0
    %1794 = vmatprep.subr.mxu0 0.0
    %1795 = vmatpush2.msra.mxu0 0.0
    %1796 = vmatprep.subr.mxu0 0.0
    %1797 = vmatpush2.msra.mxu0 0.0
    %1798 = vmatprep.subr.mxu0 0.0
    %1799 = vmatpush2.msra.mxu0 0.0
    %1800 = vmatprep.subr.mxu0 0.0
    %1801 = vmatpush2.msra.mxu0 0.0
    %1802 = vmatprep.subr.mxu0 0.0
    %1803 = vmatpush2.msra.mxu0 0.0
    %1804 = vmatprep.subr.mxu0 0.0
    %1805 = vmatpush2.msra.mxu0 0.0
    %1806 = vmatprep.subr.mxu0 0.0
    %1807 = vmatpush2.msra.mxu0 0.0
    %1808 = vmatprep.mubr.f32.mxu0 0.0
    %1809 = vmatmul.mubr.f32.gmra.mxu0 %v1501
    %v1810 = vpop.f32.mrf.mxu0
    %v1811 = vadd.f32 0.0, %v1810
    %v1812 = vpop.f32.mrf.mxu0
    %1813 = vdwg.mxu0
    %v1814 = vadd.f32 %v1725, %v1811
    %v1815 = vld [vmem:[#allocation22] sm:$0x1]
    %v1817 = vlaneseq
    %v1818 = vshrl.u32 %v1817, 7
    %v1819 = vsub.s32 0, %v1818
    %v1820 = vrot.slane %v1815, %v1819
    %v1822 = vadd.f32 %v1814, %v1820
    %v1823 = vld [vmem:[%s22] sm:$0xff]
    %v1824 = vld [vmem:[%s22 + $0x8] sm:$0xff]
    %v1825 = vld [vmem:[%s22 + $0x10] sm:$0xff]
    %v1826 = vld [vmem:[%s22 + $0x18] sm:$0xff]
    %v1827 = vld [vmem:[%s22 + $0x20] sm:$0xff]
    %v1828 = vld [vmem:[%s22 + $0x28] sm:$0xff]
    %v1829 = vld [vmem:[%s22 + $0x30] sm:$0xff]
    %v1830 = vld [vmem:[%s22 + $0x38] sm:$0xff]
    %v1831 = vld [vmem:[#allocation24] sm:$0x1]
    %v1833 = vlaneseq
    %v1834 = vshrl.u32 %v1833, 7
    %v1835 = vsub.s32 0, %v1834
    %v1836 = vrot.slane %v1831, %v1835
    %1838 = vmatprep.subr.mxu0 0.0
    %1839 = vmatpush1.msra.mxu0 0.0
    %1840 = vmatprep.subr.mxu0 0.0
    %1841 = vmatpush1.msra.mxu0 0.0
    %1842 = vmatprep.subr.mxu0 0.0
    %1843 = vmatpush1.msra.mxu0 0.0
    %1844 = vmatprep.subr.mxu0 0.0
    %1845 = vmatpush1.msra.mxu0 0.0
    %1846 = vmatprep.subr.mxu0 0.0
    %1847 = vmatpush1.msra.mxu0 0.0
    %1848 = vmatprep.subr.mxu0 0.0
    %1849 = vmatpush1.msra.mxu0 0.0
    %1850 = vmatprep.subr.mxu0 0.0
    %1851 = vmatpush1.msra.mxu0 0.0
    %1852 = vmatprep.subr.mxu0 0.0
    %1853 = vmatpush1.msra.mxu0 0.0
    %1854 = vmatprep.subr.mxu0 0.0
    %1855 = vmatpush1.msra.mxu0 %v1830
    %1856 = vmatprep.subr.mxu0 0.0
    %1857 = vmatpush1.msra.mxu0 %v1829
    %1858 = vmatprep.subr.mxu0 0.0
    %1859 = vmatpush1.msra.mxu0 %v1828
    %1860 = vmatprep.subr.mxu0 0.0
    %1861 = vmatpush1.msra.mxu0 %v1827
    %1862 = vmatprep.subr.mxu0 0.0
    %1863 = vmatpush1.msra.mxu0 %v1826
    %1864 = vmatprep.subr.mxu0 0.0
    %1865 = vmatpush1.msra.mxu0 %v1825
    %1866 = vmatprep.subr.mxu0 0.0
    %1867 = vmatpush1.msra.mxu0 %v1824
    %1868 = vmatprep.subr.mxu0 0.0
    %1869 = vmatpush1.msra.mxu0 %v1823
    %1870 = vmatprep.subr.mxu0 0.0
    %1871 = vmatpush2.msra.mxu0 0.0
    %1872 = vmatprep.subr.mxu0 0.0
    %1873 = vmatpush2.msra.mxu0 0.0
    %1874 = vmatprep.subr.mxu0 0.0
    %1875 = vmatpush2.msra.mxu0 0.0
    %1876 = vmatprep.subr.mxu0 0.0
    %1877 = vmatpush2.msra.mxu0 0.0
    %1878 = vmatprep.subr.mxu0 0.0
    %1879 = vmatpush2.msra.mxu0 0.0
    %1880 = vmatprep.subr.mxu0 0.0
    %1881 = vmatpush2.msra.mxu0 0.0
    %1882 = vmatprep.subr.mxu0 0.0
    %1883 = vmatpush2.msra.mxu0 0.0
    %1884 = vmatprep.subr.mxu0 0.0
    %1885 = vmatpush2.msra.mxu0 0.0
    %1886 = vmatprep.subr.mxu0 0.0
    %1887 = vmatpush2.msra.mxu0 0.0
    %1888 = vmatprep.subr.mxu0 0.0
    %1889 = vmatpush2.msra.mxu0 0.0
    %1890 = vmatprep.subr.mxu0 0.0
    %1891 = vmatpush2.msra.mxu0 0.0
    %1892 = vmatprep.subr.mxu0 0.0
    %1893 = vmatpush2.msra.mxu0 0.0
    %1894 = vmatprep.subr.mxu0 0.0
    %1895 = vmatpush2.msra.mxu0 0.0
    %1896 = vmatprep.subr.mxu0 0.0
    %1897 = vmatpush2.msra.mxu0 0.0
    %1898 = vmatprep.subr.mxu0 0.0
    %1899 = vmatpush2.msra.mxu0 0.0
    %1900 = vmatprep.subr.mxu0 0.0
    %1901 = vmatpush2.msra.mxu0 0.0
    %1902 = vmatprep.mubr.f32.mxu0 0.0
    %1903 = vmatmul.mubr.f32.gmra.mxu0 %v289
    %v1904 = vpop.f32.mrf.mxu0
    %v1905 = vadd.f32 %v1836, %v1904
    %v1906 = vpop.f32.mrf.mxu0
    %1907 = vdwg.mxu0
    %v1908 = vadd.f32 %v1822, %v1905
    %vm1909 = vcmask 254976
    %1910 = vst.msk [vmem:[%s24] sm:$0x3] %vm1909, %v1908
    // Predicated region
    $region158: #{model_forward.1} parent=1 // pred_check
      _
    $region159: #{model_forward.1} parent=1 // pred_check_branch
      %1912 = sbr.rel (0) target = $region161
    $region160: #{model_forward.1} parent=1 // pred_region
      _
    $region161: #{model_forward.1} parent=1 // pred_fallthru
      _
    // Predicated region
    $region162: #{model_forward.1} parent=1 // pred_check
      _
    $region163: #{model_forward.1} parent=1 // pred_check_branch
      %1914 = sbr.rel (0) target = $region165
    $region164: #{model_forward.1} parent=1 // pred_region
      _
    $region165: #{model_forward.1} parent=1 // pred_fallthru
      _
    %1915 = vsyncpa [#allocation3], 1
    %1916 = vsyncpa [#allocation5], 1
    %1917 = vsyncpa [#allocation8], 1
    %1918 = vsyncpa [#allocation11], 1
    %1919 = vsyncpa [#allocation14], 1
    %1920 = vsyncpa [#allocation17], 1
    %1921 = vsyncpa [#allocation20], 1
    %1922 = vsyncpa [#allocation23], 1

</llo_original>
